<compile_context>
chip_gen: v7x
topology: tpu7x:2x2x1
jax: 0.10.0
libtpu: 0.0.40
codegen_flags: <defaults>
</compile_context>

<pallas_src>
import functools

import jax
import jax.numpy as jnp
from jax import lax
from jax.experimental import pallas as pl
from jax.experimental.pallas import tpu as pltpu


def _round_up(x, m):
    return ((x + m - 1) // m) * m


# -----------------------------------------------------------------------------
# Kernel
# -----------------------------------------------------------------------------
def _lstm_kernel(T, BB, HP,
                 ids_ref,      # VMEM (T*BB, 1) int32, time-major rows: r = t*BB + i
                 table_ref,    # VMEM (VP, 4*HP) f32  (embedding @ w_ih^T, gate-padded 0)
                 bias_ref,     # VMEM (1, 4*HP)  f32  (b_ih + b_hh, gate-padded 0)
                 w_hh_ref,     # VMEM (HP, 4*HP) f32  (w_hh^T, zero-padded)
                 w_ht_ref,     # VMEM (HP, LP)   f32  (w_ht^T, zero-padded)
                 b_ht_ref,     # VMEM (1, LP)    f32  (b_ht, padded with -1e30)
                 out_ref):     # VMEM (BB, LP)   f32  log-probs (first L lanes valid)
    VP = table_ref.shape[0]

    # Fused embedding lookup + input projection: a single MXU matmul of a
    # one-hot(ids) matrix against the precomputed (V, 4H) table.  Replaces the
    # former 64 serial scalar-indexed row copies and the K=E matmul.
    onehot = (ids_ref[...] ==
              lax.broadcasted_iota(jnp.int32, (T * BB, VP), 1)).astype(jnp.float32)
    gates_x = jnp.dot(onehot, table_ref[...],
                      preferred_element_type=jnp.float32) + bias_ref[...]    # (T*BB, 4HP)

    w_hh = w_hh_ref[...]
    h = jnp.zeros((BB, HP), jnp.float32)
    c = jnp.zeros((BB, HP), jnp.float32)

    # Statically unrolled recurrence (T is small).  Each gate is a full-vreg,
    # 128-lane-aligned slab thanks to per-gate padding; padded lanes of h/c stay
    # exactly 0 (sigmoid(0)*0 + sigmoid(0)*tanh(0) == 0), so results are exact.
    # TODO(synk): for large T, switch to lax.fori_loop(unroll=4..8) to bound vreg
    # live ranges and stage w_hh in MXU weight regs via pltpu.matmul_push_rhs/.../pop.
    for t in range(T):
        g = gates_x[t * BB:(t + 1) * BB, :] + jnp.dot(
            h, w_hh, preferred_element_type=jnp.float32)                     # (BB, 4HP)
        i_g = jax.nn.sigmoid(g[:, 0:HP])
        f_g = jax.nn.sigmoid(g[:, HP:2 * HP])
        g_g = jnp.tanh(g[:, 2 * HP:3 * HP])
        o_g = jax.nn.sigmoid(g[:, 3 * HP:4 * HP])
        c = f_g * c + i_g * g_g
        h = o_g * jnp.tanh(c)

    # hidden2tag + log_softmax over a lane-dense (LP = 128) output block.
    # Padded logit lanes are -1e30 so exp() == 0: the normalization over the
    # first L lanes is exact; the wrapper slices [:, :L].
    logits = jnp.dot(h, w_ht_ref[...],
                     preferred_element_type=jnp.float32) + b_ht_ref[...]     # (BB, LP)
    m = jnp.max(logits, axis=-1, keepdims=True)
    shifted = logits - m
    lse = jnp.log(jnp.sum(jnp.exp(shifted), axis=-1, keepdims=True))
    out_ref[...] = shifted - lse


# -----------------------------------------------------------------------------
# One-time weight packing (outside the forward path)
# -----------------------------------------------------------------------------
def prepare_params(params):
    emb = jnp.asarray(params["embedding"], jnp.float32)     # (V, E)
    w_ih = jnp.asarray(params["w_ih"], jnp.float32)         # (4H, E)
    w_hh = jnp.asarray(params["w_hh"], jnp.float32)         # (4H, H)
    bias = (jnp.asarray(params["b_ih"], jnp.float32)
            + jnp.asarray(params["b_hh"], jnp.float32))     # (4H,)
    w_ht = jnp.asarray(params["w_ht"], jnp.float32)         # (L, H)
    b_ht = jnp.asarray(params["b_ht"], jnp.float32)         # (L,)

    V, _ = emb.shape
    H = w_hh.shape[1]
    L = w_ht.shape[0]
    HP = _round_up(H, 128)          # per-gate lane padding
    LP = _round_up(L, 128)          # lane-dense output
    VP = _round_up(V, 8)            # sublane-aligned table rows

    # Fold embedding into the input projection (exact: linear follows lookup).
    table = jnp.dot(emb, w_ih.T, precision=lax.Precision.HIGHEST)           # (V, 4H)

    def pad_gate_cols(x):           # (..., 4H) -> (..., 4*HP), zero-pad each gate
        parts = [x[..., k * H:(k + 1) * H] for k in range(4)]
        parts = [jnp.pad(p, [(0, 0)] * (p.ndim - 1) + [(0, HP - H)]) for p in parts]
        return jnp.concatenate(parts, axis=-1)

    table_p = jnp.zeros((VP, 4 * HP), jnp.float32).at[:V].set(pad_gate_cols(table))
    bias_p = pad_gate_cols(bias[None, :])                                   # (1, 4HP)
    w_hh_p = jnp.zeros((HP, 4 * HP), jnp.float32).at[:H].set(pad_gate_cols(w_hh.T))
    w_ht_p = jnp.zeros((HP, LP), jnp.float32).at[:H, :L].set(w_ht.T)
    b_ht_p = jnp.full((1, LP), -1e30, jnp.float32).at[0, :L].set(b_ht)

    return {"table": table_p, "bias": bias_p, "w_hh": w_hh_p,
            "w_ht": w_ht_p, "b_ht": b_ht_p, "label_size": int(L)}


# -----------------------------------------------------------------------------
# Wrapper
# -----------------------------------------------------------------------------
def _choose_block_b(B):
    """BB = B on single-TC chips (v5e/v6e); two blocks (one per TC) on v7x."""
    try:
        kind = jax.devices()[0].device_kind.lower()
    except Exception:
        kind = ""
    is_v7 = ("v7" in kind) or ("7x" in kind)
    if is_v7 and B >= 16 and B % 16 == 0:
        return B // 2       # nb == 2: one batch block per TensorCore (megacore)
    return B                # grid of 1: no per-grid-step pipeline overhead


@functools.partial(jax.jit, static_argnames=("block_b",))
def _forward_impl(sentences, table, bias, w_hh, w_ht, b_ht, *, block_b):
    B, T = sentences.shape
    BB = block_b
    nb = B // BB
    HP = table.shape[1] // 4
    LP = w_ht.shape[1]

    # Time-major ids per batch block: row (b, t*BB + i) = sentences[b*BB + i, t].
    ids = sentences.astype(jnp.int32).reshape(nb, BB, T).transpose(0, 2, 1)
    ids = ids.reshape(nb * T * BB, 1)

    kernel = functools.partial(_lstm_kernel, T, BB, HP)

    def rep(arr):
        # Whole-array VMEM block, same tile for every grid step (weights are tiny).
        # TODO(synk): at realistic vocab sizes switch the table to memory_space=pl.ANY
        # and DMA only the needed rows (scalar-prefetch-driven) to avoid VMEM blowup.
        return pl.BlockSpec(arr.shape, lambda b: (0, 0))

    return pl.pallas_call(
        kernel,
        out_shape=jax.ShapeDtypeStruct((B, LP), jnp.float32),
        grid_spec=pltpu.PrefetchScalarGridSpec(
            num_scalar_prefetch=0,
            grid=(nb,),
            in_specs=[pl.BlockSpec((T * BB, 1), lambda b: (b, 0)),
                      rep(table), rep(bias), rep(w_hh), rep(w_ht), rep(b_ht)],
            out_specs=pl.BlockSpec((BB, LP), lambda b: (b, 0)),
        ),
        compiler_params=pltpu.CompilerParams(
            dimension_semantics=("parallel",)),   # shards batch blocks across v7x TCs
    )(ids, table, bias, w_hh, w_ht, b_ht)


def lstm_forward_batch(sentences, prepared):
    """Log-probs for a batch of equal-length sentences: (B, T) int32 -> (B, L)."""
    sentences = jnp.asarray(sentences, jnp.int32)
    if sentences.ndim == 1:
        sentences = sentences[None, :]
    B, _ = sentences.shape
    out = _forward_impl(sentences, prepared["table"], prepared["bias"],
                        prepared["w_hh"], prepared["w_ht"], prepared["b_ht"],
                        block_b=_choose_block_b(B))
    return out[:, :prepared["label_size"]]


def lstm_citation_classification(sentence, prepared):
    """forward(sentence) of the PyTorch module: (T,) int32 -> (1, label_size)."""
    return lstm_forward_batch(sentence[None, :], prepared)


# -----------------------------------------------------------------------------
# Pure-JAX reference (mirrors torch.nn.LSTM / Linear / log_softmax semantics)
# -----------------------------------------------------------------------------
def reference_forward(sentence, params):
    embeds = jnp.take(params["embedding"], sentence, axis=0)
    H = params["w_hh"].shape[1]

    def step(carry, x_t):
        h, c = carry
        g = params["w_ih"] @ x_t + params["b_ih"] + params["w_hh"] @ h + params["b_hh"]
        i_g = jax.nn.sigmoid(g[0:H])
        f_g = jax.nn.sigmoid(g[H:2 * H])
        g_g = jnp.tanh(g[2 * H:3 * H])
        o_g = jax.nn.sigmoid(g[3 * H:4 * H])
        c_new = f_g * c + i_g * g_g
        h_new = o_g * jnp.tanh(c_new)
        return (h_new, c_new), h_new

    (h_T, _), _ = lax.scan(step, (jnp.zeros(H), jnp.zeros(H)), embeds)
    logits = params["w_ht"] @ h_T + params["b_ht"]
    return jax.nn.log_softmax(logits)          # (L,)


if __name__ == "__main__":
    embedding_dim = 16
    hidden_dim = 32
    vocab_size = 50
    label_size = 8
    seq_len = 8
    batch = 16

    key = jax.random.PRNGKey(0)
    keys = jax.random.split(key, 8)
    params = {
        "embedding": 0.1 * jax.random.normal(keys[0], (vocab_size, embedding_dim), jnp.float32),
        "w_ih": 0.1 * jax.random.normal(keys[1], (4 * hidden_dim, embedding_dim), jnp.float32),
        "w_hh": 0.1 * jax.random.normal(keys[2], (4 * hidden_dim, hidden_dim), jnp.float32),
        "b_ih": 0.1 * jax.random.normal(keys[3], (4 * hidden_dim,), jnp.float32),
        "b_hh": 0.1 * jax.random.normal(keys[4], (4 * hidden_dim,), jnp.float32),
        "w_ht": 0.1 * jax.random.normal(keys[5], (label_size, hidden_dim), jnp.float32),
        "b_ht": 0.1 * jax.random.normal(keys[6], (label_size,), jnp.float32),
    }
    sentences = jax.random.randint(keys[7], (batch, seq_len), 0, vocab_size, dtype=jnp.int32)

    prepared = prepare_params(params)   # one-time packing, outside the forward path

    # Batched kernel call (1 grid step on v5e/v6e, 2 parallel blocks on v7x).
    out = jax.block_until_ready(lstm_forward_batch(sentences, prepared))

    # Single-sentence call, exactly matching the PyTorch module's forward (B = 1).
    out1 = jax.block_until_ready(lstm_citation_classification(sentences[0], prepared))

    ref = jnp.stack([reference_forward(s, params) for s in sentences])

    assert out.shape == (batch, label_size)
    assert out1.shape == (1, label_size)
    assert jnp.allclose(out, ref, atol=2e-4, rtol=2e-4), (out, ref)
    assert jnp.allclose(out1, ref[0:1], atol=2e-4, rtol=2e-4), (out1, ref[0:1])
    print("KERNEL_OK")
</pallas_src>

<mosaic_0001>
module attributes {stable_mosaic.version = 11 : i64} {
  func.func @_lstm_kernel(%arg0: i32, %arg1: memref<128x1xi32, #tpu.memory_space<vmem>>, %arg2: memref<56x512xf32, #tpu.memory_space<vmem>>, %arg3: memref<1x512xf32, #tpu.memory_space<vmem>>, %arg4: memref<128x512xf32, #tpu.memory_space<vmem>>, %arg5: memref<128x128xf32, #tpu.memory_space<vmem>>, %arg6: memref<1x128xf32, #tpu.memory_space<vmem>>, %arg7: memref<16x128xf32, #tpu.memory_space<vmem>>) attributes {dimension_semantics = [#tpu.dimension_semantics<parallel>], iteration_bounds = array<i64: 1>, scalar_prefetch = 0 : i64, scratch_operands = 0 : i64, tpu.core_type = #tpu.core_type<tc>, window_params = [{transform_indices = @transform_0, window_bounds = array<i64: 128, 1>}, {pipeline_mode = #tpu.pipeline_mode<synchronous>, transform_indices = @transform_1, window_bounds = array<i64: 56, 512>}, {pipeline_mode = #tpu.pipeline_mode<synchronous>, transform_indices = @transform_2, window_bounds = array<i64: 1, 512>}, {pipeline_mode = #tpu.pipeline_mode<synchronous>, transform_indices = @transform_3, window_bounds = array<i64: 128, 512>}, {pipeline_mode = #tpu.pipeline_mode<synchronous>, transform_indices = @transform_4, window_bounds = array<i64: 128, 128>}, {pipeline_mode = #tpu.pipeline_mode<synchronous>, transform_indices = @transform_5, window_bounds = array<i64: 1, 128>}, {transform_indices = @transform_6, window_bounds = array<i64: 16, 128>}]} {
    %c0 = arith.constant 0 : index
    %c0_0 = arith.constant 0 : index
    %0 = vector.load %arg1[%c0, %c0_0] : memref<128x1xi32, #tpu.memory_space<vmem>>, vector<128x1xi32>
    %1 = tpu.iota {dimensions = array<i32: 1>} : vector<128x56xi32>
    %2 = vector.broadcast %0 : vector<128x1xi32> to vector<128x56xi32>
    %3 = arith.cmpi eq, %2, %1 : vector<128x56xi32>
    %4 = arith.extui %3 : vector<128x56xi1> to vector<128x56xi32>
    %5 = arith.sitofp %4 : vector<128x56xi32> to vector<128x56xf32>
    %c0_1 = arith.constant 0 : index
    %c0_2 = arith.constant 0 : index
    %6 = vector.load %arg2[%c0_1, %c0_2] : memref<56x512xf32, #tpu.memory_space<vmem>>, vector<56x512xf32>
    %cst = arith.constant dense<0.000000e+00> : vector<128x512xf32>
    %7 = tpu.matmul %5, %6, %cst {dimension_numbers = #tpu.dot_dimension_numbers<[1], [0], [0], [1], [0, 0, 1, 1], [], []>} : vector<128x56xf32>, vector<56x512xf32>, vector<128x512xf32> -> vector<128x512xf32>
    %c0_3 = arith.constant 0 : index
    %c0_4 = arith.constant 0 : index
    %8 = vector.load %arg3[%c0_3, %c0_4] : memref<1x512xf32, #tpu.memory_space<vmem>>, vector<1x512xf32>
    %9 = vector.broadcast %8 : vector<1x512xf32> to vector<128x512xf32>
    %10 = arith.addf %7, %9 : vector<128x512xf32>
    %c0_5 = arith.constant 0 : index
    %c0_6 = arith.constant 0 : index
    %11 = vector.load %arg4[%c0_5, %c0_6] : memref<128x512xf32, #tpu.memory_space<vmem>>, vector<128x512xf32>
    %cst_7 = arith.constant 0.000000e+00 : f32
    %12 = vector.broadcast %cst_7 : f32 to vector<16x128xf32>
    %cst_8 = arith.constant 0.000000e+00 : f32
    %13 = vector.broadcast %cst_8 : f32 to vector<16x128xf32>
    %14 = vector.extract_strided_slice %10 {offsets = [0, 0], sizes = [16, 512], strides = [1, 1]} : vector<128x512xf32> to vector<16x512xf32>
    %cst_9 = arith.constant dense<0.000000e+00> : vector<16x512xf32>
    %15 = tpu.matmul %12, %11, %cst_9 {dimension_numbers = #tpu.dot_dimension_numbers<[1], [0], [0], [1], [0, 0, 1, 1], [], []>} : vector<16x128xf32>, vector<128x512xf32>, vector<16x512xf32> -> vector<16x512xf32>
    %16 = arith.addf %14, %15 : vector<16x512xf32>
    %17 = vector.extract_strided_slice %16 {offsets = [0, 0], sizes = [16, 128], strides = [1, 1]} : vector<16x512xf32> to vector<16x128xf32>
    %18 = arith.negf %17 : vector<16x128xf32>
    %19 = math.exp %18 : vector<16x128xf32>
    %cst_10 = arith.constant 1.000000e+00 : f32
    %20 = vector.broadcast %cst_10 : f32 to vector<16x128xf32>
    %21 = arith.addf %20, %19 : vector<16x128xf32>
    %22 = arith.divf %20, %21 : vector<16x128xf32>
    %23 = vector.extract_strided_slice %16 {offsets = [0, 128], sizes = [16, 128], strides = [1, 1]} : vector<16x512xf32> to vector<16x128xf32>
    %24 = arith.negf %23 : vector<16x128xf32>
    %25 = math.exp %24 : vector<16x128xf32>
    %cst_11 = arith.constant 1.000000e+00 : f32
    %26 = vector.broadcast %cst_11 : f32 to vector<16x128xf32>
    %27 = arith.addf %26, %25 : vector<16x128xf32>
    %28 = arith.divf %26, %27 : vector<16x128xf32>
    %29 = vector.extract_strided_slice %16 {offsets = [0, 256], sizes = [16, 128], strides = [1, 1]} : vector<16x512xf32> to vector<16x128xf32>
    %30 = math.tanh %29 : vector<16x128xf32>
    %31 = vector.extract_strided_slice %16 {offsets = [0, 384], sizes = [16, 128], strides = [1, 1]} : vector<16x512xf32> to vector<16x128xf32>
    %32 = arith.negf %31 : vector<16x128xf32>
    %33 = math.exp %32 : vector<16x128xf32>
    %cst_12 = arith.constant 1.000000e+00 : f32
    %34 = vector.broadcast %cst_12 : f32 to vector<16x128xf32>
    %35 = arith.addf %34, %33 : vector<16x128xf32>
    %36 = arith.divf %34, %35 : vector<16x128xf32>
    %37 = arith.mulf %28, %13 : vector<16x128xf32>
    %38 = arith.mulf %22, %30 : vector<16x128xf32>
    %39 = arith.addf %37, %38 : vector<16x128xf32>
    %40 = math.tanh %39 : vector<16x128xf32>
    %41 = arith.mulf %36, %40 : vector<16x128xf32>
    %42 = vector.extract_strided_slice %10 {offsets = [16, 0], sizes = [16, 512], strides = [1, 1]} : vector<128x512xf32> to vector<16x512xf32>
    %cst_13 = arith.constant dense<0.000000e+00> : vector<16x512xf32>
    %43 = tpu.matmul %41, %11, %cst_13 {dimension_numbers = #tpu.dot_dimension_numbers<[1], [0], [0], [1], [0, 0, 1, 1], [], []>} : vector<16x128xf32>, vector<128x512xf32>, vector<16x512xf32> -> vector<16x512xf32>
    %44 = arith.addf %42, %43 : vector<16x512xf32>
    %45 = vector.extract_strided_slice %44 {offsets = [0, 0], sizes = [16, 128], strides = [1, 1]} : vector<16x512xf32> to vector<16x128xf32>
    %46 = arith.negf %45 : vector<16x128xf32>
    %47 = math.exp %46 : vector<16x128xf32>
    %cst_14 = arith.constant 1.000000e+00 : f32
    %48 = vector.broadcast %cst_14 : f32 to vector<16x128xf32>
    %49 = arith.addf %48, %47 : vector<16x128xf32>
    %50 = arith.divf %48, %49 : vector<16x128xf32>
    %51 = vector.extract_strided_slice %44 {offsets = [0, 128], sizes = [16, 128], strides = [1, 1]} : vector<16x512xf32> to vector<16x128xf32>
    %52 = arith.negf %51 : vector<16x128xf32>
    %53 = math.exp %52 : vector<16x128xf32>
    %cst_15 = arith.constant 1.000000e+00 : f32
    %54 = vector.broadcast %cst_15 : f32 to vector<16x128xf32>
    %55 = arith.addf %54, %53 : vector<16x128xf32>
    %56 = arith.divf %54, %55 : vector<16x128xf32>
    %57 = vector.extract_strided_slice %44 {offsets = [0, 256], sizes = [16, 128], strides = [1, 1]} : vector<16x512xf32> to vector<16x128xf32>
    %58 = math.tanh %57 : vector<16x128xf32>
    %59 = vector.extract_strided_slice %44 {offsets = [0, 384], sizes = [16, 128], strides = [1, 1]} : vector<16x512xf32> to vector<16x128xf32>
    %60 = arith.negf %59 : vector<16x128xf32>
    %61 = math.exp %60 : vector<16x128xf32>
    %cst_16 = arith.constant 1.000000e+00 : f32
    %62 = vector.broadcast %cst_16 : f32 to vector<16x128xf32>
    %63 = arith.addf %62, %61 : vector<16x128xf32>
    %64 = arith.divf %62, %63 : vector<16x128xf32>
    %65 = arith.mulf %56, %39 : vector<16x128xf32>
    %66 = arith.mulf %50, %58 : vector<16x128xf32>
    %67 = arith.addf %65, %66 : vector<16x128xf32>
    %68 = math.tanh %67 : vector<16x128xf32>
    %69 = arith.mulf %64, %68 : vector<16x128xf32>
    %70 = vector.extract_strided_slice %10 {offsets = [32, 0], sizes = [16, 512], strides = [1, 1]} : vector<128x512xf32> to vector<16x512xf32>
    %cst_17 = arith.constant dense<0.000000e+00> : vector<16x512xf32>
    %71 = tpu.matmul %69, %11, %cst_17 {dimension_numbers = #tpu.dot_dimension_numbers<[1], [0], [0], [1], [0, 0, 1, 1], [], []>} : vector<16x128xf32>, vector<128x512xf32>, vector<16x512xf32> -> vector<16x512xf32>
    %72 = arith.addf %70, %71 : vector<16x512xf32>
    %73 = vector.extract_strided_slice %72 {offsets = [0, 0], sizes = [16, 128], strides = [1, 1]} : vector<16x512xf32> to vector<16x128xf32>
    %74 = arith.negf %73 : vector<16x128xf32>
    %75 = math.exp %74 : vector<16x128xf32>
    %cst_18 = arith.constant 1.000000e+00 : f32
    %76 = vector.broadcast %cst_18 : f32 to vector<16x128xf32>
    %77 = arith.addf %76, %75 : vector<16x128xf32>
    %78 = arith.divf %76, %77 : vector<16x128xf32>
    %79 = vector.extract_strided_slice %72 {offsets = [0, 128], sizes = [16, 128], strides = [1, 1]} : vector<16x512xf32> to vector<16x128xf32>
    %80 = arith.negf %79 : vector<16x128xf32>
    %81 = math.exp %80 : vector<16x128xf32>
    %cst_19 = arith.constant 1.000000e+00 : f32
    %82 = vector.broadcast %cst_19 : f32 to vector<16x128xf32>
    %83 = arith.addf %82, %81 : vector<16x128xf32>
    %84 = arith.divf %82, %83 : vector<16x128xf32>
    %85 = vector.extract_strided_slice %72 {offsets = [0, 256], sizes = [16, 128], strides = [1, 1]} : vector<16x512xf32> to vector<16x128xf32>
    %86 = math.tanh %85 : vector<16x128xf32>
    %87 = vector.extract_strided_slice %72 {offsets = [0, 384], sizes = [16, 128], strides = [1, 1]} : vector<16x512xf32> to vector<16x128xf32>
    %88 = arith.negf %87 : vector<16x128xf32>
    %89 = math.exp %88 : vector<16x128xf32>
    %cst_20 = arith.constant 1.000000e+00 : f32
    %90 = vector.broadcast %cst_20 : f32 to vector<16x128xf32>
    %91 = arith.addf %90, %89 : vector<16x128xf32>
    %92 = arith.divf %90, %91 : vector<16x128xf32>
    %93 = arith.mulf %84, %67 : vector<16x128xf32>
    %94 = arith.mulf %78, %86 : vector<16x128xf32>
    %95 = arith.addf %93, %94 : vector<16x128xf32>
    %96 = math.tanh %95 : vector<16x128xf32>
    %97 = arith.mulf %92, %96 : vector<16x128xf32>
    %98 = vector.extract_strided_slice %10 {offsets = [48, 0], sizes = [16, 512], strides = [1, 1]} : vector<128x512xf32> to vector<16x512xf32>
    %cst_21 = arith.constant dense<0.000000e+00> : vector<16x512xf32>
    %99 = tpu.matmul %97, %11, %cst_21 {dimension_numbers = #tpu.dot_dimension_numbers<[1], [0], [0], [1], [0, 0, 1, 1], [], []>} : vector<16x128xf32>, vector<128x512xf32>, vector<16x512xf32> -> vector<16x512xf32>
    %100 = arith.addf %98, %99 : vector<16x512xf32>
    %101 = vector.extract_strided_slice %100 {offsets = [0, 0], sizes = [16, 128], strides = [1, 1]} : vector<16x512xf32> to vector<16x128xf32>
    %102 = arith.negf %101 : vector<16x128xf32>
    %103 = math.exp %102 : vector<16x128xf32>
    %cst_22 = arith.constant 1.000000e+00 : f32
    %104 = vector.broadcast %cst_22 : f32 to vector<16x128xf32>
    %105 = arith.addf %104, %103 : vector<16x128xf32>
    %106 = arith.divf %104, %105 : vector<16x128xf32>
    %107 = vector.extract_strided_slice %100 {offsets = [0, 128], sizes = [16, 128], strides = [1, 1]} : vector<16x512xf32> to vector<16x128xf32>
    %108 = arith.negf %107 : vector<16x128xf32>
    %109 = math.exp %108 : vector<16x128xf32>
    %cst_23 = arith.constant 1.000000e+00 : f32
    %110 = vector.broadcast %cst_23 : f32 to vector<16x128xf32>
    %111 = arith.addf %110, %109 : vector<16x128xf32>
    %112 = arith.divf %110, %111 : vector<16x128xf32>
    %113 = vector.extract_strided_slice %100 {offsets = [0, 256], sizes = [16, 128], strides = [1, 1]} : vector<16x512xf32> to vector<16x128xf32>
    %114 = math.tanh %113 : vector<16x128xf32>
    %115 = vector.extract_strided_slice %100 {offsets = [0, 384], sizes = [16, 128], strides = [1, 1]} : vector<16x512xf32> to vector<16x128xf32>
    %116 = arith.negf %115 : vector<16x128xf32>
    %117 = math.exp %116 : vector<16x128xf32>
    %cst_24 = arith.constant 1.000000e+00 : f32
    %118 = vector.broadcast %cst_24 : f32 to vector<16x128xf32>
    %119 = arith.addf %118, %117 : vector<16x128xf32>
    %120 = arith.divf %118, %119 : vector<16x128xf32>
    %121 = arith.mulf %112, %95 : vector<16x128xf32>
    %122 = arith.mulf %106, %114 : vector<16x128xf32>
    %123 = arith.addf %121, %122 : vector<16x128xf32>
    %124 = math.tanh %123 : vector<16x128xf32>
    %125 = arith.mulf %120, %124 : vector<16x128xf32>
    %126 = vector.extract_strided_slice %10 {offsets = [64, 0], sizes = [16, 512], strides = [1, 1]} : vector<128x512xf32> to vector<16x512xf32>
    %cst_25 = arith.constant dense<0.000000e+00> : vector<16x512xf32>
    %127 = tpu.matmul %125, %11, %cst_25 {dimension_numbers = #tpu.dot_dimension_numbers<[1], [0], [0], [1], [0, 0, 1, 1], [], []>} : vector<16x128xf32>, vector<128x512xf32>, vector<16x512xf32> -> vector<16x512xf32>
    %128 = arith.addf %126, %127 : vector<16x512xf32>
    %129 = vector.extract_strided_slice %128 {offsets = [0, 0], sizes = [16, 128], strides = [1, 1]} : vector<16x512xf32> to vector<16x128xf32>
    %130 = arith.negf %129 : vector<16x128xf32>
    %131 = math.exp %130 : vector<16x128xf32>
    %cst_26 = arith.constant 1.000000e+00 : f32
    %132 = vector.broadcast %cst_26 : f32 to vector<16x128xf32>
    %133 = arith.addf %132, %131 : vector<16x128xf32>
    %134 = arith.divf %132, %133 : vector<16x128xf32>
    %135 = vector.extract_strided_slice %128 {offsets = [0, 128], sizes = [16, 128], strides = [1, 1]} : vector<16x512xf32> to vector<16x128xf32>
    %136 = arith.negf %135 : vector<16x128xf32>
    %137 = math.exp %136 : vector<16x128xf32>
    %cst_27 = arith.constant 1.000000e+00 : f32
    %138 = vector.broadcast %cst_27 : f32 to vector<16x128xf32>
    %139 = arith.addf %138, %137 : vector<16x128xf32>
    %140 = arith.divf %138, %139 : vector<16x128xf32>
    %141 = vector.extract_strided_slice %128 {offsets = [0, 256], sizes = [16, 128], strides = [1, 1]} : vector<16x512xf32> to vector<16x128xf32>
    %142 = math.tanh %141 : vector<16x128xf32>
    %143 = vector.extract_strided_slice %128 {offsets = [0, 384], sizes = [16, 128], strides = [1, 1]} : vector<16x512xf32> to vector<16x128xf32>
    %144 = arith.negf %143 : vector<16x128xf32>
    %145 = math.exp %144 : vector<16x128xf32>
    %cst_28 = arith.constant 1.000000e+00 : f32
    %146 = vector.broadcast %cst_28 : f32 to vector<16x128xf32>
    %147 = arith.addf %146, %145 : vector<16x128xf32>
    %148 = arith.divf %146, %147 : vector<16x128xf32>
    %149 = arith.mulf %140, %123 : vector<16x128xf32>
    %150 = arith.mulf %134, %142 : vector<16x128xf32>
    %151 = arith.addf %149, %150 : vector<16x128xf32>
    %152 = math.tanh %151 : vector<16x128xf32>
    %153 = arith.mulf %148, %152 : vector<16x128xf32>
    %154 = vector.extract_strided_slice %10 {offsets = [80, 0], sizes = [16, 512], strides = [1, 1]} : vector<128x512xf32> to vector<16x512xf32>
    %cst_29 = arith.constant dense<0.000000e+00> : vector<16x512xf32>
    %155 = tpu.matmul %153, %11, %cst_29 {dimension_numbers = #tpu.dot_dimension_numbers<[1], [0], [0], [1], [0, 0, 1, 1], [], []>} : vector<16x128xf32>, vector<128x512xf32>, vector<16x512xf32> -> vector<16x512xf32>
    %156 = arith.addf %154, %155 : vector<16x512xf32>
    %157 = vector.extract_strided_slice %156 {offsets = [0, 0], sizes = [16, 128], strides = [1, 1]} : vector<16x512xf32> to vector<16x128xf32>
    %158 = arith.negf %157 : vector<16x128xf32>
    %159 = math.exp %158 : vector<16x128xf32>
    %cst_30 = arith.constant 1.000000e+00 : f32
    %160 = vector.broadcast %cst_30 : f32 to vector<16x128xf32>
    %161 = arith.addf %160, %159 : vector<16x128xf32>
    %162 = arith.divf %160, %161 : vector<16x128xf32>
    %163 = vector.extract_strided_slice %156 {offsets = [0, 128], sizes = [16, 128], strides = [1, 1]} : vector<16x512xf32> to vector<16x128xf32>
    %164 = arith.negf %163 : vector<16x128xf32>
    %165 = math.exp %164 : vector<16x128xf32>
    %cst_31 = arith.constant 1.000000e+00 : f32
    %166 = vector.broadcast %cst_31 : f32 to vector<16x128xf32>
    %167 = arith.addf %166, %165 : vector<16x128xf32>
    %168 = arith.divf %166, %167 : vector<16x128xf32>
    %169 = vector.extract_strided_slice %156 {offsets = [0, 256], sizes = [16, 128], strides = [1, 1]} : vector<16x512xf32> to vector<16x128xf32>
    %170 = math.tanh %169 : vector<16x128xf32>
    %171 = vector.extract_strided_slice %156 {offsets = [0, 384], sizes = [16, 128], strides = [1, 1]} : vector<16x512xf32> to vector<16x128xf32>
    %172 = arith.negf %171 : vector<16x128xf32>
    %173 = math.exp %172 : vector<16x128xf32>
    %cst_32 = arith.constant 1.000000e+00 : f32
    %174 = vector.broadcast %cst_32 : f32 to vector<16x128xf32>
    %175 = arith.addf %174, %173 : vector<16x128xf32>
    %176 = arith.divf %174, %175 : vector<16x128xf32>
    %177 = arith.mulf %168, %151 : vector<16x128xf32>
    %178 = arith.mulf %162, %170 : vector<16x128xf32>
    %179 = arith.addf %177, %178 : vector<16x128xf32>
    %180 = math.tanh %179 : vector<16x128xf32>
    %181 = arith.mulf %176, %180 : vector<16x128xf32>
    %182 = vector.extract_strided_slice %10 {offsets = [96, 0], sizes = [16, 512], strides = [1, 1]} : vector<128x512xf32> to vector<16x512xf32>
    %cst_33 = arith.constant dense<0.000000e+00> : vector<16x512xf32>
    %183 = tpu.matmul %181, %11, %cst_33 {dimension_numbers = #tpu.dot_dimension_numbers<[1], [0], [0], [1], [0, 0, 1, 1], [], []>} : vector<16x128xf32>, vector<128x512xf32>, vector<16x512xf32> -> vector<16x512xf32>
    %184 = arith.addf %182, %183 : vector<16x512xf32>
    %185 = vector.extract_strided_slice %184 {offsets = [0, 0], sizes = [16, 128], strides = [1, 1]} : vector<16x512xf32> to vector<16x128xf32>
    %186 = arith.negf %185 : vector<16x128xf32>
    %187 = math.exp %186 : vector<16x128xf32>
    %cst_34 = arith.constant 1.000000e+00 : f32
    %188 = vector.broadcast %cst_34 : f32 to vector<16x128xf32>
    %189 = arith.addf %188, %187 : vector<16x128xf32>
    %190 = arith.divf %188, %189 : vector<16x128xf32>
    %191 = vector.extract_strided_slice %184 {offsets = [0, 128], sizes = [16, 128], strides = [1, 1]} : vector<16x512xf32> to vector<16x128xf32>
    %192 = arith.negf %191 : vector<16x128xf32>
    %193 = math.exp %192 : vector<16x128xf32>
    %cst_35 = arith.constant 1.000000e+00 : f32
    %194 = vector.broadcast %cst_35 : f32 to vector<16x128xf32>
    %195 = arith.addf %194, %193 : vector<16x128xf32>
    %196 = arith.divf %194, %195 : vector<16x128xf32>
    %197 = vector.extract_strided_slice %184 {offsets = [0, 256], sizes = [16, 128], strides = [1, 1]} : vector<16x512xf32> to vector<16x128xf32>
    %198 = math.tanh %197 : vector<16x128xf32>
    %199 = vector.extract_strided_slice %184 {offsets = [0, 384], sizes = [16, 128], strides = [1, 1]} : vector<16x512xf32> to vector<16x128xf32>
    %200 = arith.negf %199 : vector<16x128xf32>
    %201 = math.exp %200 : vector<16x128xf32>
    %cst_36 = arith.constant 1.000000e+00 : f32
    %202 = vector.broadcast %cst_36 : f32 to vector<16x128xf32>
    %203 = arith.addf %202, %201 : vector<16x128xf32>
    %204 = arith.divf %202, %203 : vector<16x128xf32>
    %205 = arith.mulf %196, %179 : vector<16x128xf32>
    %206 = arith.mulf %190, %198 : vector<16x128xf32>
    %207 = arith.addf %205, %206 : vector<16x128xf32>
    %208 = math.tanh %207 : vector<16x128xf32>
    %209 = arith.mulf %204, %208 : vector<16x128xf32>
    %210 = vector.extract_strided_slice %10 {offsets = [112, 0], sizes = [16, 512], strides = [1, 1]} : vector<128x512xf32> to vector<16x512xf32>
    %cst_37 = arith.constant dense<0.000000e+00> : vector<16x512xf32>
    %211 = tpu.matmul %209, %11, %cst_37 {dimension_numbers = #tpu.dot_dimension_numbers<[1], [0], [0], [1], [0, 0, 1, 1], [], []>} : vector<16x128xf32>, vector<128x512xf32>, vector<16x512xf32> -> vector<16x512xf32>
    %212 = arith.addf %210, %211 : vector<16x512xf32>
    %213 = vector.extract_strided_slice %212 {offsets = [0, 0], sizes = [16, 128], strides = [1, 1]} : vector<16x512xf32> to vector<16x128xf32>
    %214 = arith.negf %213 : vector<16x128xf32>
    %215 = math.exp %214 : vector<16x128xf32>
    %cst_38 = arith.constant 1.000000e+00 : f32
    %216 = vector.broadcast %cst_38 : f32 to vector<16x128xf32>
    %217 = arith.addf %216, %215 : vector<16x128xf32>
    %218 = arith.divf %216, %217 : vector<16x128xf32>
    %219 = vector.extract_strided_slice %212 {offsets = [0, 128], sizes = [16, 128], strides = [1, 1]} : vector<16x512xf32> to vector<16x128xf32>
    %220 = arith.negf %219 : vector<16x128xf32>
    %221 = math.exp %220 : vector<16x128xf32>
    %cst_39 = arith.constant 1.000000e+00 : f32
    %222 = vector.broadcast %cst_39 : f32 to vector<16x128xf32>
    %223 = arith.addf %222, %221 : vector<16x128xf32>
    %224 = arith.divf %222, %223 : vector<16x128xf32>
    %225 = vector.extract_strided_slice %212 {offsets = [0, 256], sizes = [16, 128], strides = [1, 1]} : vector<16x512xf32> to vector<16x128xf32>
    %226 = math.tanh %225 : vector<16x128xf32>
    %227 = vector.extract_strided_slice %212 {offsets = [0, 384], sizes = [16, 128], strides = [1, 1]} : vector<16x512xf32> to vector<16x128xf32>
    %228 = arith.negf %227 : vector<16x128xf32>
    %229 = math.exp %228 : vector<16x128xf32>
    %cst_40 = arith.constant 1.000000e+00 : f32
    %230 = vector.broadcast %cst_40 : f32 to vector<16x128xf32>
    %231 = arith.addf %230, %229 : vector<16x128xf32>
    %232 = arith.divf %230, %231 : vector<16x128xf32>
    %233 = arith.mulf %224, %207 : vector<16x128xf32>
    %234 = arith.mulf %218, %226 : vector<16x128xf32>
    %235 = arith.addf %233, %234 : vector<16x128xf32>
    %236 = math.tanh %235 : vector<16x128xf32>
    %237 = arith.mulf %232, %236 : vector<16x128xf32>
    %c0_41 = arith.constant 0 : index
    %c0_42 = arith.constant 0 : index
    %238 = vector.load %arg5[%c0_41, %c0_42] : memref<128x128xf32, #tpu.memory_space<vmem>>, vector<128x128xf32>
    %cst_43 = arith.constant dense<0.000000e+00> : vector<16x128xf32>
    %239 = tpu.matmul %237, %238, %cst_43 {dimension_numbers = #tpu.dot_dimension_numbers<[1], [0], [0], [1], [0, 0, 1, 1], [], []>} : vector<16x128xf32>, vector<128x128xf32>, vector<16x128xf32> -> vector<16x128xf32>
    %c0_44 = arith.constant 0 : index
    %c0_45 = arith.constant 0 : index
    %240 = vector.load %arg6[%c0_44, %c0_45] : memref<1x128xf32, #tpu.memory_space<vmem>>, vector<1x128xf32>
    %241 = vector.broadcast %240 : vector<1x128xf32> to vector<16x128xf32>
    %242 = arith.addf %239, %241 : vector<16x128xf32>
    %cst_46 = arith.constant dense<0xFF800000> : vector<16xf32>
    %243 = vector.multi_reduction <maximumf>, %242, %cst_46 [1] : vector<16x128xf32> to vector<16xf32>
    %244 = vector.shape_cast %243 : vector<16xf32> to vector<16x1xf32>
    %245 = vector.broadcast %244 : vector<16x1xf32> to vector<16x128xf32>
    %246 = arith.subf %242, %245 : vector<16x128xf32>
    %247 = math.exp %246 : vector<16x128xf32>
    %cst_47 = arith.constant dense<0.000000e+00> : vector<16xf32>
    %248 = vector.multi_reduction <add>, %247, %cst_47 [1] : vector<16x128xf32> to vector<16xf32>
    %249 = vector.shape_cast %248 : vector<16xf32> to vector<16x1xf32>
    %250 = math.log %249 : vector<16x1xf32>
    %251 = vector.broadcast %250 : vector<16x1xf32> to vector<16x128xf32>
    %252 = arith.subf %246, %251 : vector<16x128xf32>
    %c0_48 = arith.constant 0 : index
    %c0_49 = arith.constant 0 : index
    %253 = vector.load %arg7[%c0_48, %c0_49] : memref<16x128xf32, #tpu.memory_space<vmem>>, vector<16x128xf32>
    tpu.vector_store %arg7[%c0_48, %c0_49], %252 {strides = array<i32>} : memref<16x128xf32, #tpu.memory_space<vmem>>, vector<16x128xf32>,
    return
  }
  func.func @transform_0(%arg0: i32) -> (i32, i32) {
    %c0_i32 = arith.constant 0 : i32
    %c0_i32_0 = arith.constant 0 : i32
    return %arg0, %c0_i32 : i32, i32
  }
  func.func @transform_1(%arg0: i32) -> (i32, i32) {
    %c0_i32 = arith.constant 0 : i32
    %c0_i32_0 = arith.constant 0 : i32
    %c0_i32_1 = arith.constant 0 : i32
    return %c0_i32, %c0_i32_0 : i32, i32
  }
  func.func @transform_2(%arg0: i32) -> (i32, i32) {
    %c0_i32 = arith.constant 0 : i32
    %c0_i32_0 = arith.constant 0 : i32
    %c0_i32_1 = arith.constant 0 : i32
    return %c0_i32, %c0_i32_0 : i32, i32
  }
  func.func @transform_3(%arg0: i32) -> (i32, i32) {
    %c0_i32 = arith.constant 0 : i32
    %c0_i32_0 = arith.constant 0 : i32
    %c0_i32_1 = arith.constant 0 : i32
    return %c0_i32, %c0_i32_0 : i32, i32
  }
  func.func @transform_4(%arg0: i32) -> (i32, i32) {
    %c0_i32 = arith.constant 0 : i32
    %c0_i32_0 = arith.constant 0 : i32
    %c0_i32_1 = arith.constant 0 : i32
    return %c0_i32, %c0_i32_0 : i32, i32
  }
  func.func @transform_5(%arg0: i32) -> (i32, i32) {
    %c0_i32 = arith.constant 0 : i32
    %c0_i32_0 = arith.constant 0 : i32
    %c0_i32_1 = arith.constant 0 : i32
    return %c0_i32, %c0_i32_0 : i32, i32
  }
  func.func @transform_6(%arg0: i32) -> (i32, i32) {
    %c0_i32 = arith.constant 0 : i32
    %c0_i32_0 = arith.constant 0 : i32
    return %arg0, %c0_i32 : i32, i32
  }
}

</mosaic_0001>

<llo_original>
// kernel: _forward_impl.1
$region0: #{_forward_impl.1}
  #allocation0 [shape = 'u32[]', space=smem, size = 0x4, offset = 0x4, fixed_abs, tag = 'smem constant byte address 0x4 - core index']
  #allocation1 [shape = 'u32[144,128]{1,0:T(1,128)}', space=vmem, size = 0x12000, scoped, tag = 'internal scratch']
  %s0 = inlined_call_operand.vmem [shape: s32[128,1], index: 0, kind: input, shape index: {}]
  %s1 = inlined_call_operand.hbm [shape: f32[56,512], index: 1, kind: input, shape index: {}]
  %s2 = inlined_call_operand.vmem [shape: f32[1,512], index: 2, kind: input, shape index: {}]
  %s3 = inlined_call_operand.hbm [shape: f32[128,512], index: 3, kind: input, shape index: {}]
  %s4 = inlined_call_operand.vmem [shape: f32[128,128], index: 4, kind: input, shape index: {}]
  %s5 = inlined_call_operand.vmem [shape: f32[1,128], index: 5, kind: input, shape index: {}]
  %s6 = inlined_call_operand.hbm [shape: f32[16,128], index: 6, kind: output, shape index: {}]
  %s7 = sld [smem:[#allocation0]]
  $region42: #{_forward_impl.1} parent=0
    _
  %s9 = ssub.s32 1, %s7
  %s10 = scalar_select 0, %s9, %s7
  $region1: #{_forward_impl.1} parent=0
    #allocation2 [shape = 'u8[114688]{0}', space=vmem, size = 0x1c000, scoped, tag = 'input window, operand 1, single buffered']
    #allocation3 [shape = 's32[1]{0}', space=sflag, size = 0x4, scoped, tag = 'scoped memory for _forward_impl.1']
    #allocation4 [shape = 's32[1]{0}', space=sflag, size = 0x4, scoped, tag = 'scoped memory for _forward_impl.1']
    #allocation5 [shape = 'u8[262144]{0}', space=vmem, size = 0x40000, scoped, tag = 'input window, operand 3, single buffered']
    #allocation6 [shape = 's32[1]{0}', space=sflag, size = 0x4, scoped, tag = 'scoped memory for _forward_impl.1']
    #allocation7 [shape = 'u8[8192]{0}', space=vmem, size = 0x2000, scoped, tag = 'output window, operand 0, single buffered']
    %11 = vsyncpa [#allocation3], 0
    %12 = vsyncpa [#allocation6], 0
    %13 = vsyncpa [#allocation4], 0
    // Predicated region
    $region2: #{_forward_impl.1} parent=1 // pred_check
      _
    $region3: #{_forward_impl.1} parent=1 // pred_check_branch
      %15 = sbr.rel (0) target = $region5
    $region4: #{_forward_impl.1} parent=1 // pred_region
      _
    $region5: #{_forward_impl.1} parent=1 // pred_fallthru
      _
    // Predicated region
    $region6: #{_forward_impl.1} parent=1 // pred_check
      _
    $region7: #{_forward_impl.1} parent=1 // pred_check_branch
      %17 = sbr.rel (0) target = $region9
    $region8: #{_forward_impl.1} parent=1 // pred_region
      %s19 = ssub.s32 3584, 3584
      %20 = vsyncadd [#allocation3], %s19
      %s21 = sshll.u32 [#allocation2], 4
      %s22 = int_to_ptr.vmem [resolvable:$true] %s21
      %27 = dma.hbm_to_vmem [thread:$0]  %s1, 3584, %s22, [#allocation3], 512, 512, 32
    $region9: #{_forward_impl.1} parent=1 // pred_fallthru
      _
    // Predicated region
    $region10: #{_forward_impl.1} parent=1 // pred_check
      _
    $region11: #{_forward_impl.1} parent=1 // pred_check_branch
      %29 = sbr.rel (0) target = $region13
    $region12: #{_forward_impl.1} parent=1 // pred_region
      _
    $region13: #{_forward_impl.1} parent=1 // pred_fallthru
      _
    // Predicated region
    $region14: #{_forward_impl.1} parent=1 // pred_check
      _
    $region15: #{_forward_impl.1} parent=1 // pred_check_branch
      %31 = sbr.rel (0) target = $region17
    $region16: #{_forward_impl.1} parent=1 // pred_region
      %s33 = ssub.s32 8192, 8192
      %34 = vsyncadd [#allocation6], %s33
      %s35 = sshll.u32 [#allocation5], 4
      %s36 = int_to_ptr.vmem [resolvable:$true] %s35
      %41 = dma.hbm_to_vmem [thread:$0]  %s3, 8192, %s36, [#allocation6], 512, 512, 32
    $region17: #{_forward_impl.1} parent=1 // pred_fallthru
      _
    // Predicated region
    $region18: #{_forward_impl.1} parent=1 // pred_check
      _
    $region19: #{_forward_impl.1} parent=1 // pred_check_branch
      %43 = sbr.rel (0) target = $region21
    $region20: #{_forward_impl.1} parent=1 // pred_region
      _
    $region21: #{_forward_impl.1} parent=1 // pred_fallthru
      _
    // Predicated region
    $region22: #{_forward_impl.1} parent=1 // pred_check
      _
    $region23: #{_forward_impl.1} parent=1 // pred_check_branch
      %45 = sbr.rel (0) target = $region25
    $region24: #{_forward_impl.1} parent=1 // pred_region
      _
    $region25: #{_forward_impl.1} parent=1 // pred_fallthru
      _
    // Predicated region
    $region26: #{_forward_impl.1} parent=1 // pred_check
      _
    $region27: #{_forward_impl.1} parent=1 // pred_check_branch
      %47 = sbr.rel (0) target = $region29
    $region28: #{_forward_impl.1} parent=1 // pred_region
      %48 = dma.done [#allocation3], 3584
    $region29: #{_forward_impl.1} parent=1 // pred_fallthru
      _
    // Predicated region
    $region30: #{_forward_impl.1} parent=1 // pred_check
      _
    $region31: #{_forward_impl.1} parent=1 // pred_check_branch
      %50 = sbr.rel (0) target = $region33
    $region32: #{_forward_impl.1} parent=1 // pred_region
      %51 = dma.done [#allocation6], 8192
    $region33: #{_forward_impl.1} parent=1 // pred_fallthru
      _
    %v52 = vld [vmem:[%s0] sm:$0xff]
    %v53 = vld [vmem:[%s0 + $0x8] sm:$0xff]
    %v54 = vld [vmem:[%s0 + $0x10] sm:$0xff]
    %v55 = vld [vmem:[%s0 + $0x18] sm:$0xff]
    %v56 = vld [vmem:[%s0 + $0x20] sm:$0xff]
    %v57 = vld [vmem:[%s0 + $0x28] sm:$0xff]
    %v58 = vld [vmem:[%s0 + $0x30] sm:$0xff]
    %v59 = vld [vmem:[%s0 + $0x38] sm:$0xff]
    %v60 = vld [vmem:[%s0 + $0x40] sm:$0xff]
    %v61 = vld [vmem:[%s0 + $0x48] sm:$0xff]
    %v62 = vld [vmem:[%s0 + $0x50] sm:$0xff]
    %v63 = vld [vmem:[%s0 + $0x58] sm:$0xff]
    %v64 = vld [vmem:[%s0 + $0x60] sm:$0xff]
    %v65 = vld [vmem:[%s0 + $0x68] sm:$0xff]
    %v66 = vld [vmem:[%s0 + $0x70] sm:$0xff]
    %v67 = vld [vmem:[%s0 + $0x78] sm:$0xff]
    %v68 = vlaneseq
    %v69 = vand.u32 %v68, 127
    %70 = vset.pattern.permute.xlu0 0
    %71 = vperm.xlu0 %70, %v52
    %v72 = vpop.permute.xlu0 %71
    %73 = vset.pattern.permute.xlu0 0
    %74 = vperm.xlu0 %73, %v53
    %v75 = vpop.permute.xlu0 %74
    %76 = vset.pattern.permute.xlu0 0
    %77 = vperm.xlu0 %76, %v54
    %v78 = vpop.permute.xlu0 %77
    %79 = vset.pattern.permute.xlu0 0
    %80 = vperm.xlu0 %79, %v55
    %v81 = vpop.permute.xlu0 %80
    %82 = vset.pattern.permute.xlu0 0
    %83 = vperm.xlu0 %82, %v56
    %v84 = vpop.permute.xlu0 %83
    %85 = vset.pattern.permute.xlu0 0
    %86 = vperm.xlu0 %85, %v57
    %v87 = vpop.permute.xlu0 %86
    %88 = vset.pattern.permute.xlu0 0
    %89 = vperm.xlu0 %88, %v58
    %v90 = vpop.permute.xlu0 %89
    %91 = vset.pattern.permute.xlu0 0
    %92 = vperm.xlu0 %91, %v59
    %v93 = vpop.permute.xlu0 %92
    %94 = vset.pattern.permute.xlu0 0
    %95 = vperm.xlu0 %94, %v60
    %v96 = vpop.permute.xlu0 %95
    %97 = vset.pattern.permute.xlu0 0
    %98 = vperm.xlu0 %97, %v61
    %v99 = vpop.permute.xlu0 %98
    %100 = vset.pattern.permute.xlu0 0
    %101 = vperm.xlu0 %100, %v62
    %v102 = vpop.permute.xlu0 %101
    %103 = vset.pattern.permute.xlu0 0
    %104 = vperm.xlu0 %103, %v63
    %v105 = vpop.permute.xlu0 %104
    %106 = vset.pattern.permute.xlu0 0
    %107 = vperm.xlu0 %106, %v64
    %v108 = vpop.permute.xlu0 %107
    %109 = vset.pattern.permute.xlu0 0
    %110 = vperm.xlu0 %109, %v65
    %v111 = vpop.permute.xlu0 %110
    %112 = vset.pattern.permute.xlu0 0
    %113 = vperm.xlu0 %112, %v66
    %v114 = vpop.permute.xlu0 %113
    %115 = vset.pattern.permute.xlu0 0
    %116 = vperm.xlu0 %115, %v67
    %v117 = vpop.permute.xlu0 %116
    %vm118 = vcmp.eq.s32.totalorder %v72, %v69
    %vm119 = vcmp.eq.s32.totalorder %v75, %v69
    %vm120 = vcmp.eq.s32.totalorder %v78, %v69
    %vm121 = vcmp.eq.s32.totalorder %v81, %v69
    %vm122 = vcmp.eq.s32.totalorder %v84, %v69
    %vm123 = vcmp.eq.s32.totalorder %v87, %v69
    %vm124 = vcmp.eq.s32.totalorder %v90, %v69
    %vm125 = vcmp.eq.s32.totalorder %v93, %v69
    %vm126 = vcmp.eq.s32.totalorder %v96, %v69
    %vm127 = vcmp.eq.s32.totalorder %v99, %v69
    %vm128 = vcmp.eq.s32.totalorder %v102, %v69
    %vm129 = vcmp.eq.s32.totalorder %v105, %v69
    %vm130 = vcmp.eq.s32.totalorder %v108, %v69
    %vm131 = vcmp.eq.s32.totalorder %v111, %v69
    %vm132 = vcmp.eq.s32.totalorder %v114, %v69
    %vm133 = vcmp.eq.s32.totalorder %v117, %v69
    %v134 = vsel %vm118, 1, 0
    %v135 = vsel %vm119, 1, 0
    %v136 = vsel %vm120, 1, 0
    %v137 = vsel %vm121, 1, 0
    %v138 = vsel %vm122, 1, 0
    %v139 = vsel %vm123, 1, 0
    %v140 = vsel %vm124, 1, 0
    %v141 = vsel %vm125, 1, 0
    %v142 = vsel %vm126, 1, 0
    %v143 = vsel %vm127, 1, 0
    %v144 = vsel %vm128, 1, 0
    %v145 = vsel %vm129, 1, 0
    %v146 = vsel %vm130, 1, 0
    %v147 = vsel %vm131, 1, 0
    %v148 = vsel %vm132, 1, 0
    %v149 = vsel %vm133, 1, 0
    %v150 = vcvt.s32.f32 %v134
    %v151 = vcvt.s32.f32 %v135
    %v152 = vcvt.s32.f32 %v136
    %v153 = vcvt.s32.f32 %v137
    %v154 = vcvt.s32.f32 %v138
    %v155 = vcvt.s32.f32 %v139
    %v156 = vcvt.s32.f32 %v140
    %v157 = vcvt.s32.f32 %v141
    %v158 = vcvt.s32.f32 %v142
    %v159 = vcvt.s32.f32 %v143
    %v160 = vcvt.s32.f32 %v144
    %v161 = vcvt.s32.f32 %v145
    %v162 = vcvt.s32.f32 %v146
    %v163 = vcvt.s32.f32 %v147
    %v164 = vcvt.s32.f32 %v148
    %v165 = vcvt.s32.f32 %v149
    %v166 = vld [vmem:[#allocation2] sm:$0xff]
    %v167 = vld [vmem:[#allocation2 + $0x8] sm:$0xff]
    %v168 = vld [vmem:[#allocation2 + $0x10] sm:$0xff]
    %v169 = vld [vmem:[#allocation2 + $0x18] sm:$0xff]
    %v170 = vld [vmem:[#allocation2 + $0x20] sm:$0xff]
    %v171 = vld [vmem:[#allocation2 + $0x28] sm:$0xff]
    %v172 = vld [vmem:[#allocation2 + $0x30] sm:$0xff]
    %v173 = vld [vmem:[#allocation2 + $0x38] sm:$0xff]
    %v174 = vld [vmem:[#allocation2 + $0x40] sm:$0xff]
    %v175 = vld [vmem:[#allocation2 + $0x48] sm:$0xff]
    %v176 = vld [vmem:[#allocation2 + $0x50] sm:$0xff]
    %v177 = vld [vmem:[#allocation2 + $0x58] sm:$0xff]
    %v178 = vld [vmem:[#allocation2 + $0x60] sm:$0xff]
    %v179 = vld [vmem:[#allocation2 + $0x68] sm:$0xff]
    %v180 = vld [vmem:[#allocation2 + $0x70] sm:$0xff]
    %v181 = vld [vmem:[#allocation2 + $0x78] sm:$0xff]
    %v182 = vld [vmem:[#allocation2 + $0x80] sm:$0xff]
    %v183 = vld [vmem:[#allocation2 + $0x88] sm:$0xff]
    %v184 = vld [vmem:[#allocation2 + $0x90] sm:$0xff]
    %v185 = vld [vmem:[#allocation2 + $0x98] sm:$0xff]
    %v186 = vld [vmem:[#allocation2 + $0xa0] sm:$0xff]
    %v187 = vld [vmem:[#allocation2 + $0xa8] sm:$0xff]
    %v188 = vld [vmem:[#allocation2 + $0xb0] sm:$0xff]
    %v189 = vld [vmem:[#allocation2 + $0xb8] sm:$0xff]
    %v190 = vld [vmem:[#allocation2 + $0xc0] sm:$0xff]
    %v191 = vld [vmem:[#allocation2 + $0xc8] sm:$0xff]
    %v192 = vld [vmem:[#allocation2 + $0xd0] sm:$0xff]
    %v193 = vld [vmem:[#allocation2 + $0xd8] sm:$0xff]
    %v194 = vld [vmem:[%s2] sm:$0xf]
    %v196 = vlaneseq
    %v197 = vshrl.u32 %v196, 7
    %v198 = vsub.s32 0, %v197
    %v199 = vrot.slane %v194, %v198
    %v200 = vlaneseq
    %v201 = vshrl.u32 %v200, 7
    %v202 = vsub.s32 1, %v201
    %v203 = vrot.slane %v194, %v202
    %v204 = vlaneseq
    %v205 = vshrl.u32 %v204, 7
    %v206 = vsub.s32 2, %v205
    %v207 = vrot.slane %v194, %v206
    %v208 = vlaneseq
    %v209 = vshrl.u32 %v208, 7
    %v210 = vsub.s32 3, %v209
    %v211 = vrot.slane %v194, %v210
    %vm216 = vcmask 457728
    %v218 = vsel %vm216, %v150, 0
    %v221 = vsel %vm216, %v151, 0
    %v224 = vsel %vm216, %v152, 0
    %v227 = vsel %vm216, %v153, 0
    %v230 = vsel %vm216, %v154, 0
    %v233 = vsel %vm216, %v155, 0
    %v236 = vsel %vm216, %v156, 0
    %v239 = vsel %vm216, %v157, 0
    %v242 = vsel %vm216, %v158, 0
    %v245 = vsel %vm216, %v159, 0
    %v248 = vsel %vm216, %v160, 0
    %v251 = vsel %vm216, %v161, 0
    %v254 = vsel %vm216, %v162, 0
    %v257 = vsel %vm216, %v163, 0
    %v260 = vsel %vm216, %v164, 0
    %v263 = vsel %vm216, %v165, 0
    %265 = vmatprep.subr.mxu0 %v167
    %266 = vmatpush1.msra.mxu0 %v166
    %267 = vmatprep.subr.mxu0 %v171
    %268 = vmatpush1.msra.mxu0 %v170
    %269 = vmatprep.subr.mxu0 %v175
    %270 = vmatpush1.msra.mxu0 %v174
    %271 = vmatprep.subr.mxu0 %v179
    %272 = vmatpush1.msra.mxu0 %v178
    %273 = vmatprep.subr.mxu0 %v183
    %274 = vmatpush1.msra.mxu0 %v182
    %275 = vmatprep.subr.mxu0 %v187
    %276 = vmatpush1.msra.mxu0 %v186
    %277 = vmatprep.subr.mxu0 %v191
    %278 = vmatpush1.msra.mxu0 %v190
    %279 = vmatprep.subr.mxu0 0.0
    %280 = vmatpush1.msra.mxu0 0.0
    %281 = vmatprep.subr.mxu0 0.0
    %282 = vmatpush1.msra.mxu0 0.0
    %283 = vmatprep.subr.mxu0 0.0
    %284 = vmatpush1.msra.mxu0 0.0
    %285 = vmatprep.subr.mxu0 0.0
    %286 = vmatpush1.msra.mxu0 0.0
    %287 = vmatprep.subr.mxu0 0.0
    %288 = vmatpush1.msra.mxu0 0.0
    %289 = vmatprep.subr.mxu0 0.0
    %290 = vmatpush1.msra.mxu0 0.0
    %291 = vmatprep.subr.mxu0 0.0
    %292 = vmatpush1.msra.mxu0 0.0
    %293 = vmatprep.subr.mxu0 0.0
    %294 = vmatpush1.msra.mxu0 0.0
    %295 = vmatprep.subr.mxu0 0.0
    %296 = vmatpush1.msra.mxu0 0.0
    %297 = vmatprep.subr.mxu0 0.0
    %298 = vmatpush1.msra.mxu0 0.0
    %299 = vmatprep.subr.mxu0 0.0
    %300 = vmatpush1.msra.mxu0 0.0
    %301 = vmatprep.subr.mxu0 0.0
    %302 = vmatpush1.msra.mxu0 0.0
    %303 = vmatprep.subr.mxu0 0.0
    %304 = vmatpush1.msra.mxu0 0.0
    %305 = vmatprep.subr.mxu0 0.0
    %306 = vmatpush1.msra.mxu0 0.0
    %307 = vmatprep.subr.mxu0 0.0
    %308 = vmatpush1.msra.mxu0 0.0
    %309 = vmatprep.subr.mxu0 0.0
    %310 = vmatpush1.msra.mxu0 0.0
    %311 = vmatprep.subr.mxu0 0.0
    %312 = vmatpush1.msra.mxu0 0.0
    %313 = vmatprep.subr.mxu0 0.0
    %314 = vmatpush1.msra.mxu0 0.0
    %315 = vmatprep.subr.mxu0 0.0
    %316 = vmatpush1.msra.mxu0 0.0
    %317 = vmatprep.subr.mxu0 0.0
    %318 = vmatpush1.msra.mxu0 0.0
    %319 = vmatprep.subr.mxu0 0.0
    %320 = vmatpush1.msra.mxu0 0.0
    %321 = vmatprep.subr.mxu0 0.0
    %322 = vmatpush1.msra.mxu0 0.0
    %323 = vmatprep.subr.mxu0 0.0
    %324 = vmatpush1.msra.mxu0 0.0
    %325 = vmatprep.subr.mxu0 0.0
    %326 = vmatpush1.msra.mxu0 0.0
    %327 = vmatprep.subr.mxu0 0.0
    %328 = vmatpush1.msra.mxu0 0.0
    %329 = vmatprep.mubr.f32.mxu0 0.0
    %330 = vmatmul.mubr.f32.gmra.mrb[0].mxu0 %v218
    %v331 = vpop.f32.mrb[0].mxu0
    %v332 = vadd.f32 %v199, %v331
    %v333 = vpop.f32.mrb[0].mxu0
    %v334 = vadd.f32 %v203, %v333
    %335 = vmatprep.mubr.f32.mxu0 0.0
    %336 = vmatmul.mubr.f32.gmra.mrb[0].mxu0 %v221
    %v337 = vpop.f32.mrb[0].mxu0
    %v338 = vadd.f32 %v199, %v337
    %v339 = vpop.f32.mrb[0].mxu0
    %v340 = vadd.f32 %v203, %v339
    %341 = vmatprep.mubr.f32.mxu0 0.0
    %342 = vmatmul.mubr.f32.gmra.mrb[0].mxu0 %v224
    %v343 = vpop.f32.mrb[0].mxu0
    %v344 = vadd.f32 %v199, %v343
    %v345 = vpop.f32.mrb[0].mxu0
    %v346 = vadd.f32 %v203, %v345
    %347 = vmatprep.mubr.f32.mxu0 0.0
    %348 = vmatmul.mubr.f32.gmra.mrb[0].mxu0 %v227
    %v349 = vpop.f32.mrb[0].mxu0
    %v350 = vadd.f32 %v199, %v349
    %v351 = vpop.f32.mrb[0].mxu0
    %v352 = vadd.f32 %v203, %v351
    %353 = vmatprep.mubr.f32.mxu0 0.0
    %354 = vmatmul.mubr.f32.gmra.mrb[0].mxu0 %v230
    %v355 = vpop.f32.mrb[0].mxu0
    %v356 = vadd.f32 %v199, %v355
    %v357 = vpop.f32.mrb[0].mxu0
    %v358 = vadd.f32 %v203, %v357
    %359 = vmatprep.mubr.f32.mxu0 0.0
    %360 = vmatmul.mubr.f32.gmra.mrb[0].mxu0 %v233
    %v361 = vpop.f32.mrb[0].mxu0
    %v362 = vadd.f32 %v199, %v361
    %v363 = vpop.f32.mrb[0].mxu0
    %v364 = vadd.f32 %v203, %v363
    %365 = vmatprep.mubr.f32.mxu0 0.0
    %366 = vmatmul.mubr.f32.gmra.mrb[0].mxu0 %v236
    %v367 = vpop.f32.mrb[0].mxu0
    %v368 = vadd.f32 %v199, %v367
    %v369 = vpop.f32.mrb[0].mxu0
    %v370 = vadd.f32 %v203, %v369
    %371 = vmatprep.mubr.f32.mxu0 0.0
    %372 = vmatmul.mubr.f32.gmra.mrb[0].mxu0 %v239
    %v373 = vpop.f32.mrb[0].mxu0
    %v374 = vadd.f32 %v199, %v373
    %v375 = vpop.f32.mrb[0].mxu0
    %v376 = vadd.f32 %v203, %v375
    %377 = vmatprep.mubr.f32.mxu0 0.0
    %378 = vmatmul.mubr.f32.gmra.mrb[0].mxu0 %v242
    %v379 = vpop.f32.mrb[0].mxu0
    %v380 = vadd.f32 %v199, %v379
    %v381 = vpop.f32.mrb[0].mxu0
    %v382 = vadd.f32 %v203, %v381
    %383 = vmatprep.mubr.f32.mxu0 0.0
    %384 = vmatmul.mubr.f32.gmra.mrb[0].mxu0 %v245
    %v385 = vpop.f32.mrb[0].mxu0
    %v386 = vadd.f32 %v199, %v385
    %v387 = vpop.f32.mrb[0].mxu0
    %v388 = vadd.f32 %v203, %v387
    %389 = vmatprep.mubr.f32.mxu0 0.0
    %390 = vmatmul.mubr.f32.gmra.mrb[0].mxu0 %v248
    %v391 = vpop.f32.mrb[0].mxu0
    %v392 = vadd.f32 %v199, %v391
    %v393 = vpop.f32.mrb[0].mxu0
    %v394 = vadd.f32 %v203, %v393
    %395 = vmatprep.mubr.f32.mxu0 0.0
    %396 = vmatmul.mubr.f32.gmra.mrb[0].mxu0 %v251
    %v397 = vpop.f32.mrb[0].mxu0
    %v398 = vadd.f32 %v199, %v397
    %v399 = vpop.f32.mrb[0].mxu0
    %v400 = vadd.f32 %v203, %v399
    %401 = vmatprep.mubr.f32.mxu0 0.0
    %402 = vmatmul.mubr.f32.gmra.mrb[0].mxu0 %v254
    %v403 = vpop.f32.mrb[0].mxu0
    %v404 = vadd.f32 %v199, %v403
    %v405 = vpop.f32.mrb[0].mxu0
    %v406 = vadd.f32 %v203, %v405
    %407 = vmatprep.mubr.f32.mxu0 0.0
    %408 = vmatmul.mubr.f32.gmra.mrb[0].mxu0 %v257
    %v409 = vpop.f32.mrb[0].mxu0
    %v410 = vadd.f32 %v199, %v409
    %v411 = vpop.f32.mrb[0].mxu0
    %v412 = vadd.f32 %v203, %v411
    %413 = vmatprep.mubr.f32.mxu0 0.0
    %414 = vmatmul.mubr.f32.gmra.mrb[0].mxu0 %v260
    %v415 = vpop.f32.mrb[0].mxu0
    %v416 = vadd.f32 %v199, %v415
    %v417 = vpop.f32.mrb[0].mxu0
    %v418 = vadd.f32 %v203, %v417
    %419 = vmatprep.mubr.f32.mxu0 0.0
    %420 = vmatmul.mubr.f32.gmra.mrb[0].mxu0 %v263
    %v421 = vpop.f32.mrb[0].mxu0
    %v422 = vadd.f32 %v199, %v421
    %v423 = vpop.f32.mrb[0].mxu0
    %v424 = vadd.f32 %v203, %v423
    %425 = vdwg.mxu0
    %426 = vmatprep.subr.mxu0 %v169
    %427 = vmatpush1.msra.mxu0 %v168
    %428 = vmatprep.subr.mxu0 %v173
    %429 = vmatpush1.msra.mxu0 %v172
    %430 = vmatprep.subr.mxu0 %v177
    %431 = vmatpush1.msra.mxu0 %v176
    %432 = vmatprep.subr.mxu0 %v181
    %433 = vmatpush1.msra.mxu0 %v180
    %434 = vmatprep.subr.mxu0 %v185
    %435 = vmatpush1.msra.mxu0 %v184
    %436 = vmatprep.subr.mxu0 %v189
    %437 = vmatpush1.msra.mxu0 %v188
    %438 = vmatprep.subr.mxu0 %v193
    %439 = vmatpush1.msra.mxu0 %v192
    %440 = vmatprep.subr.mxu0 0.0
    %441 = vmatpush1.msra.mxu0 0.0
    %442 = vmatprep.subr.mxu0 0.0
    %443 = vmatpush1.msra.mxu0 0.0
    %444 = vmatprep.subr.mxu0 0.0
    %445 = vmatpush1.msra.mxu0 0.0
    %446 = vmatprep.subr.mxu0 0.0
    %447 = vmatpush1.msra.mxu0 0.0
    %448 = vmatprep.subr.mxu0 0.0
    %449 = vmatpush1.msra.mxu0 0.0
    %450 = vmatprep.subr.mxu0 0.0
    %451 = vmatpush1.msra.mxu0 0.0
    %452 = vmatprep.subr.mxu0 0.0
    %453 = vmatpush1.msra.mxu0 0.0
    %454 = vmatprep.subr.mxu0 0.0
    %455 = vmatpush1.msra.mxu0 0.0
    %456 = vmatprep.subr.mxu0 0.0
    %457 = vmatpush1.msra.mxu0 0.0
    %458 = vmatprep.subr.mxu0 0.0
    %459 = vmatpush1.msra.mxu0 0.0
    %460 = vmatprep.subr.mxu0 0.0
    %461 = vmatpush1.msra.mxu0 0.0
    %462 = vmatprep.subr.mxu0 0.0
    %463 = vmatpush1.msra.mxu0 0.0
    %464 = vmatprep.subr.mxu0 0.0
    %465 = vmatpush1.msra.mxu0 0.0
    %466 = vmatprep.subr.mxu0 0.0
    %467 = vmatpush1.msra.mxu0 0.0
    %468 = vmatprep.subr.mxu0 0.0
    %469 = vmatpush1.msra.mxu0 0.0
    %470 = vmatprep.subr.mxu0 0.0
    %471 = vmatpush1.msra.mxu0 0.0
    %472 = vmatprep.subr.mxu0 0.0
    %473 = vmatpush1.msra.mxu0 0.0
    %474 = vmatprep.subr.mxu0 0.0
    %475 = vmatpush1.msra.mxu0 0.0
    %476 = vmatprep.subr.mxu0 0.0
    %477 = vmatpush1.msra.mxu0 0.0
    %478 = vmatprep.subr.mxu0 0.0
    %479 = vmatpush1.msra.mxu0 0.0
    %480 = vmatprep.subr.mxu0 0.0
    %481 = vmatpush1.msra.mxu0 0.0
    %482 = vmatprep.subr.mxu0 0.0
    %483 = vmatpush1.msra.mxu0 0.0
    %484 = vmatprep.subr.mxu0 0.0
    %485 = vmatpush1.msra.mxu0 0.0
    %486 = vmatprep.subr.mxu0 0.0
    %487 = vmatpush1.msra.mxu0 0.0
    %488 = vmatprep.subr.mxu0 0.0
    %489 = vmatpush1.msra.mxu0 0.0
    %490 = vmatprep.mubr.f32.mxu0 0.0
    %491 = vmatmul.mubr.f32.gmra.mrb[0].mxu0 %v218
    %v492 = vpop.f32.mrb[0].mxu0
    %v493 = vadd.f32 %v207, %v492
    %v494 = vpop.f32.mrb[0].mxu0
    %v495 = vadd.f32 %v211, %v494
    %496 = vmatprep.mubr.f32.mxu0 0.0
    %497 = vmatmul.mubr.f32.gmra.mrb[0].mxu0 %v221
    %v498 = vpop.f32.mrb[0].mxu0
    %v499 = vadd.f32 %v207, %v498
    %v500 = vpop.f32.mrb[0].mxu0
    %v501 = vadd.f32 %v211, %v500
    %502 = vmatprep.mubr.f32.mxu0 0.0
    %503 = vmatmul.mubr.f32.gmra.mrb[0].mxu0 %v224
    %v504 = vpop.f32.mrb[0].mxu0
    %v505 = vadd.f32 %v207, %v504
    %v506 = vpop.f32.mrb[0].mxu0
    %v507 = vadd.f32 %v211, %v506
    %508 = vmatprep.mubr.f32.mxu0 0.0
    %509 = vmatmul.mubr.f32.gmra.mrb[0].mxu0 %v227
    %v510 = vpop.f32.mrb[0].mxu0
    %v511 = vadd.f32 %v207, %v510
    %v512 = vpop.f32.mrb[0].mxu0
    %v513 = vadd.f32 %v211, %v512
    %514 = vmatprep.mubr.f32.mxu0 0.0
    %515 = vmatmul.mubr.f32.gmra.mrb[0].mxu0 %v230
    %v516 = vpop.f32.mrb[0].mxu0
    %v517 = vadd.f32 %v207, %v516
    %v518 = vpop.f32.mrb[0].mxu0
    %v519 = vadd.f32 %v211, %v518
    %520 = vmatprep.mubr.f32.mxu0 0.0
    %521 = vmatmul.mubr.f32.gmra.mrb[0].mxu0 %v233
    %v522 = vpop.f32.mrb[0].mxu0
    %v523 = vadd.f32 %v207, %v522
    %v524 = vpop.f32.mrb[0].mxu0
    %v525 = vadd.f32 %v211, %v524
    %526 = vmatprep.mubr.f32.mxu0 0.0
    %527 = vmatmul.mubr.f32.gmra.mrb[0].mxu0 %v236
    %v528 = vpop.f32.mrb[0].mxu0
    %v529 = vadd.f32 %v207, %v528
    %v530 = vpop.f32.mrb[0].mxu0
    %v531 = vadd.f32 %v211, %v530
    %532 = vmatprep.mubr.f32.mxu0 0.0
    %533 = vmatmul.mubr.f32.gmra.mrb[0].mxu0 %v239
    %v534 = vpop.f32.mrb[0].mxu0
    %v535 = vadd.f32 %v207, %v534
    %v536 = vpop.f32.mrb[0].mxu0
    %v537 = vadd.f32 %v211, %v536
    %538 = vmatprep.mubr.f32.mxu0 0.0
    %539 = vmatmul.mubr.f32.gmra.mrb[0].mxu0 %v242
    %v540 = vpop.f32.mrb[0].mxu0
    %v541 = vadd.f32 %v207, %v540
    %v542 = vpop.f32.mrb[0].mxu0
    %v543 = vadd.f32 %v211, %v542
    %544 = vmatprep.mubr.f32.mxu0 0.0
    %545 = vmatmul.mubr.f32.gmra.mrb[0].mxu0 %v245
    %v546 = vpop.f32.mrb[0].mxu0
    %v547 = vadd.f32 %v207, %v546
    %v548 = vpop.f32.mrb[0].mxu0
    %v549 = vadd.f32 %v211, %v548
    %550 = vmatprep.mubr.f32.mxu0 0.0
    %551 = vmatmul.mubr.f32.gmra.mrb[0].mxu0 %v248
    %v552 = vpop.f32.mrb[0].mxu0
    %v553 = vadd.f32 %v207, %v552
    %v554 = vpop.f32.mrb[0].mxu0
    %v555 = vadd.f32 %v211, %v554
    %556 = vmatprep.mubr.f32.mxu0 0.0
    %557 = vmatmul.mubr.f32.gmra.mrb[0].mxu0 %v251
    %v558 = vpop.f32.mrb[0].mxu0
    %v559 = vadd.f32 %v207, %v558
    %v560 = vpop.f32.mrb[0].mxu0
    %v561 = vadd.f32 %v211, %v560
    %562 = vmatprep.mubr.f32.mxu0 0.0
    %563 = vmatmul.mubr.f32.gmra.mrb[0].mxu0 %v254
    %v564 = vpop.f32.mrb[0].mxu0
    %v565 = vadd.f32 %v207, %v564
    %v566 = vpop.f32.mrb[0].mxu0
    %v567 = vadd.f32 %v211, %v566
    %568 = vmatprep.mubr.f32.mxu0 0.0
    %569 = vmatmul.mubr.f32.gmra.mrb[0].mxu0 %v257
    %v570 = vpop.f32.mrb[0].mxu0
    %v571 = vadd.f32 %v207, %v570
    %v572 = vpop.f32.mrb[0].mxu0
    %v573 = vadd.f32 %v211, %v572
    %574 = vmatprep.mubr.f32.mxu0 0.0
    %575 = vmatmul.mubr.f32.gmra.mrb[0].mxu0 %v260
    %v576 = vpop.f32.mrb[0].mxu0
    %v577 = vadd.f32 %v207, %v576
    %v578 = vpop.f32.mrb[0].mxu0
    %v579 = vadd.f32 %v211, %v578
    %580 = vmatprep.mubr.f32.mxu0 0.0
    %581 = vmatmul.mubr.f32.gmra.mrb[0].mxu0 %v263
    %v582 = vpop.f32.mrb[0].mxu0
    %v583 = vadd.f32 %v207, %v582
    %v584 = vpop.f32.mrb[0].mxu0
    %v585 = vadd.f32 %v211, %v584
    %586 = vdwg.mxu0
    %v587 = vld [vmem:[#allocation5] sm:$0xff]
    %v588 = vld [vmem:[#allocation5 + $0x8] sm:$0xff]
    %v589 = vld [vmem:[#allocation5 + $0x10] sm:$0xff]
    %v590 = vld [vmem:[#allocation5 + $0x18] sm:$0xff]
    %v591 = vld [vmem:[#allocation5 + $0x20] sm:$0xff]
    %v592 = vld [vmem:[#allocation5 + $0x28] sm:$0xff]
    %v593 = vld [vmem:[#allocation5 + $0x30] sm:$0xff]
    %v594 = vld [vmem:[#allocation5 + $0x38] sm:$0xff]
    %v595 = vld [vmem:[#allocation5 + $0x40] sm:$0xff]
    %v596 = vld [vmem:[#allocation5 + $0x48] sm:$0xff]
    %v597 = vld [vmem:[#allocation5 + $0x50] sm:$0xff]
    %v598 = vld [vmem:[#allocation5 + $0x58] sm:$0xff]
    %v599 = vld [vmem:[#allocation5 + $0x60] sm:$0xff]
    %v600 = vld [vmem:[#allocation5 + $0x68] sm:$0xff]
    %v601 = vld [vmem:[#allocation5 + $0x70] sm:$0xff]
    %v602 = vld [vmem:[#allocation5 + $0x78] sm:$0xff]
    %v603 = vld [vmem:[#allocation5 + $0x80] sm:$0xff]
    %v604 = vld [vmem:[#allocation5 + $0x88] sm:$0xff]
    %v605 = vld [vmem:[#allocation5 + $0x90] sm:$0xff]
    %v606 = vld [vmem:[#allocation5 + $0x98] sm:$0xff]
    %v607 = vld [vmem:[#allocation5 + $0xa0] sm:$0xff]
    %v608 = vld [vmem:[#allocation5 + $0xa8] sm:$0xff]
    %v609 = vld [vmem:[#allocation5 + $0xb0] sm:$0xff]
    %v610 = vld [vmem:[#allocation5 + $0xb8] sm:$0xff]
    %v611 = vld [vmem:[#allocation5 + $0xc0] sm:$0xff]
    %v612 = vld [vmem:[#allocation5 + $0xc8] sm:$0xff]
    %v613 = vld [vmem:[#allocation5 + $0xd0] sm:$0xff]
    %v614 = vld [vmem:[#allocation5 + $0xd8] sm:$0xff]
    %v615 = vld [vmem:[#allocation5 + $0xe0] sm:$0xff]
    %v616 = vld [vmem:[#allocation5 + $0xe8] sm:$0xff]
    %v617 = vld [vmem:[#allocation5 + $0xf0] sm:$0xff]
    %v618 = vld [vmem:[#allocation5 + $0xf8] sm:$0xff]
    %v619 = vld [vmem:[#allocation5 + $0x100] sm:$0xff]
    %v620 = vld [vmem:[#allocation5 + $0x108] sm:$0xff]
    %v621 = vld [vmem:[#allocation5 + $0x110] sm:$0xff]
    %v622 = vld [vmem:[#allocation5 + $0x118] sm:$0xff]
    %v623 = vld [vmem:[#allocation5 + $0x120] sm:$0xff]
    %v624 = vld [vmem:[#allocation5 + $0x128] sm:$0xff]
    %v625 = vld [vmem:[#allocation5 + $0x130] sm:$0xff]
    %v626 = vld [vmem:[#allocation5 + $0x138] sm:$0xff]
    %v627 = vld [vmem:[#allocation5 + $0x140] sm:$0xff]
    %v628 = vld [vmem:[#allocation5 + $0x148] sm:$0xff]
    %v629 = vld [vmem:[#allocation5 + $0x150] sm:$0xff]
    %v630 = vld [vmem:[#allocation5 + $0x158] sm:$0xff]
    %v631 = vld [vmem:[#allocation5 + $0x160] sm:$0xff]
    %v632 = vld [vmem:[#allocation5 + $0x168] sm:$0xff]
    %v633 = vld [vmem:[#allocation5 + $0x170] sm:$0xff]
    %v634 = vld [vmem:[#allocation5 + $0x178] sm:$0xff]
    %v635 = vld [vmem:[#allocation5 + $0x180] sm:$0xff]
    %v636 = vld [vmem:[#allocation5 + $0x188] sm:$0xff]
    %v637 = vld [vmem:[#allocation5 + $0x190] sm:$0xff]
    %v638 = vld [vmem:[#allocation5 + $0x198] sm:$0xff]
    %v639 = vld [vmem:[#allocation5 + $0x1a0] sm:$0xff]
    %v640 = vld [vmem:[#allocation5 + $0x1a8] sm:$0xff]
    %v641 = vld [vmem:[#allocation5 + $0x1b0] sm:$0xff]
    %v642 = vld [vmem:[#allocation5 + $0x1b8] sm:$0xff]
    %v643 = vld [vmem:[#allocation5 + $0x1c0] sm:$0xff]
    %v644 = vld [vmem:[#allocation5 + $0x1c8] sm:$0xff]
    %v645 = vld [vmem:[#allocation5 + $0x1d0] sm:$0xff]
    %v646 = vld [vmem:[#allocation5 + $0x1d8] sm:$0xff]
    %v647 = vld [vmem:[#allocation5 + $0x1e0] sm:$0xff]
    %v648 = vld [vmem:[#allocation5 + $0x1e8] sm:$0xff]
    %v649 = vld [vmem:[#allocation5 + $0x1f0] sm:$0xff]
    %v650 = vld [vmem:[#allocation5 + $0x1f8] sm:$0xff]
    %651 = vmatprep.subr.mxu0 %v588
    %652 = vmatpush1.msra.mxu0 %v587
    %653 = vmatprep.subr.mxu0 %v592
    %654 = vmatpush1.msra.mxu0 %v591
    %655 = vmatprep.subr.mxu0 %v596
    %656 = vmatpush1.msra.mxu0 %v595
    %657 = vmatprep.subr.mxu0 %v600
    %658 = vmatpush1.msra.mxu0 %v599
    %659 = vmatprep.subr.mxu0 %v604
    %660 = vmatpush1.msra.mxu0 %v603
    %661 = vmatprep.subr.mxu0 %v608
    %662 = vmatpush1.msra.mxu0 %v607
    %663 = vmatprep.subr.mxu0 %v612
    %664 = vmatpush1.msra.mxu0 %v611
    %665 = vmatprep.subr.mxu0 %v616
    %666 = vmatpush1.msra.mxu0 %v615
    %667 = vmatprep.subr.mxu0 %v620
    %668 = vmatpush1.msra.mxu0 %v619
    %669 = vmatprep.subr.mxu0 %v624
    %670 = vmatpush1.msra.mxu0 %v623
    %671 = vmatprep.subr.mxu0 %v628
    %672 = vmatpush1.msra.mxu0 %v627
    %673 = vmatprep.subr.mxu0 %v632
    %674 = vmatpush1.msra.mxu0 %v631
    %675 = vmatprep.subr.mxu0 %v636
    %676 = vmatpush1.msra.mxu0 %v635
    %677 = vmatprep.subr.mxu0 %v640
    %678 = vmatpush1.msra.mxu0 %v639
    %679 = vmatprep.subr.mxu0 %v644
    %680 = vmatpush1.msra.mxu0 %v643
    %681 = vmatprep.subr.mxu0 %v648
    %682 = vmatpush1.msra.mxu0 %v647
    %683 = vmatprep.subr.mxu0 0.0
    %684 = vmatpush1.msra.mxu0 0.0
    %685 = vmatprep.subr.mxu0 0.0
    %686 = vmatpush1.msra.mxu0 0.0
    %687 = vmatprep.subr.mxu0 0.0
    %688 = vmatpush1.msra.mxu0 0.0
    %689 = vmatprep.subr.mxu0 0.0
    %690 = vmatpush1.msra.mxu0 0.0
    %691 = vmatprep.subr.mxu0 0.0
    %692 = vmatpush1.msra.mxu0 0.0
    %693 = vmatprep.subr.mxu0 0.0
    %694 = vmatpush1.msra.mxu0 0.0
    %695 = vmatprep.subr.mxu0 0.0
    %696 = vmatpush1.msra.mxu0 0.0
    %697 = vmatprep.subr.mxu0 0.0
    %698 = vmatpush1.msra.mxu0 0.0
    %699 = vmatprep.subr.mxu0 0.0
    %700 = vmatpush1.msra.mxu0 0.0
    %701 = vmatprep.subr.mxu0 0.0
    %702 = vmatpush1.msra.mxu0 0.0
    %703 = vmatprep.subr.mxu0 0.0
    %704 = vmatpush1.msra.mxu0 0.0
    %705 = vmatprep.subr.mxu0 0.0
    %706 = vmatpush1.msra.mxu0 0.0
    %707 = vmatprep.subr.mxu0 0.0
    %708 = vmatpush1.msra.mxu0 0.0
    %709 = vmatprep.subr.mxu0 0.0
    %710 = vmatpush1.msra.mxu0 0.0
    %711 = vmatprep.subr.mxu0 0.0
    %712 = vmatpush1.msra.mxu0 0.0
    %713 = vmatprep.subr.mxu0 0.0
    %714 = vmatpush1.msra.mxu0 0.0
    %715 = vmatprep.mubr.f32.mxu0 0.0
    %716 = vmatmul.mubr.f32.gmra.mrb[0].mxu0 0.0
    %v717 = vpop.f32.mrb[0].mxu0
    %v718 = vadd.f32 0.0, %v717
    %v719 = vpop.f32.mrb[0].mxu0
    %v720 = vadd.f32 0.0, %v719
    %721 = vmatprep.mubr.f32.mxu0 0.0
    %722 = vmatmul.mubr.f32.gmra.mrb[0].mxu0 0.0
    %v723 = vpop.f32.mrb[0].mxu0
    %v724 = vadd.f32 0.0, %v723
    %v725 = vpop.f32.mrb[0].mxu0
    %v726 = vadd.f32 0.0, %v725
    %727 = vdwg.mxu0
    %728 = vmatprep.subr.mxu0 %v590
    %729 = vmatpush1.msra.mxu0 %v589
    %730 = vmatprep.subr.mxu0 %v594
    %731 = vmatpush1.msra.mxu0 %v593
    %732 = vmatprep.subr.mxu0 %v598
    %733 = vmatpush1.msra.mxu0 %v597
    %734 = vmatprep.subr.mxu0 %v602
    %735 = vmatpush1.msra.mxu0 %v601
    %736 = vmatprep.subr.mxu0 %v606
    %737 = vmatpush1.msra.mxu0 %v605
    %738 = vmatprep.subr.mxu0 %v610
    %739 = vmatpush1.msra.mxu0 %v609
    %740 = vmatprep.subr.mxu0 %v614
    %741 = vmatpush1.msra.mxu0 %v613
    %742 = vmatprep.subr.mxu0 %v618
    %743 = vmatpush1.msra.mxu0 %v617
    %744 = vmatprep.subr.mxu0 %v622
    %745 = vmatpush1.msra.mxu0 %v621
    %746 = vmatprep.subr.mxu0 %v626
    %747 = vmatpush1.msra.mxu0 %v625
    %748 = vmatprep.subr.mxu0 %v630
    %749 = vmatpush1.msra.mxu0 %v629
    %750 = vmatprep.subr.mxu0 %v634
    %751 = vmatpush1.msra.mxu0 %v633
    %752 = vmatprep.subr.mxu0 %v638
    %753 = vmatpush1.msra.mxu0 %v637
    %754 = vmatprep.subr.mxu0 %v642
    %755 = vmatpush1.msra.mxu0 %v641
    %756 = vmatprep.subr.mxu0 %v646
    %757 = vmatpush1.msra.mxu0 %v645
    %758 = vmatprep.subr.mxu0 %v650
    %759 = vmatpush1.msra.mxu0 %v649
    %760 = vmatprep.subr.mxu0 0.0
    %761 = vmatpush1.msra.mxu0 0.0
    %762 = vmatprep.subr.mxu0 0.0
    %763 = vmatpush1.msra.mxu0 0.0
    %764 = vmatprep.subr.mxu0 0.0
    %765 = vmatpush1.msra.mxu0 0.0
    %766 = vmatprep.subr.mxu0 0.0
    %767 = vmatpush1.msra.mxu0 0.0
    %768 = vmatprep.subr.mxu0 0.0
    %769 = vmatpush1.msra.mxu0 0.0
    %770 = vmatprep.subr.mxu0 0.0
    %771 = vmatpush1.msra.mxu0 0.0
    %772 = vmatprep.subr.mxu0 0.0
    %773 = vmatpush1.msra.mxu0 0.0
    %774 = vmatprep.subr.mxu0 0.0
    %775 = vmatpush1.msra.mxu0 0.0
    %776 = vmatprep.subr.mxu0 0.0
    %777 = vmatpush1.msra.mxu0 0.0
    %778 = vmatprep.subr.mxu0 0.0
    %779 = vmatpush1.msra.mxu0 0.0
    %780 = vmatprep.subr.mxu0 0.0
    %781 = vmatpush1.msra.mxu0 0.0
    %782 = vmatprep.subr.mxu0 0.0
    %783 = vmatpush1.msra.mxu0 0.0
    %784 = vmatprep.subr.mxu0 0.0
    %785 = vmatpush1.msra.mxu0 0.0
    %786 = vmatprep.subr.mxu0 0.0
    %787 = vmatpush1.msra.mxu0 0.0
    %788 = vmatprep.subr.mxu0 0.0
    %789 = vmatpush1.msra.mxu0 0.0
    %790 = vmatprep.subr.mxu0 0.0
    %791 = vmatpush1.msra.mxu0 0.0
    %792 = vmatprep.mubr.f32.mxu0 0.0
    %793 = vmatmul.mubr.f32.gmra.mrb[0].mxu0 0.0
    %v794 = vpop.f32.mrb[0].mxu0
    %v795 = vadd.f32 0.0, %v794
    %v796 = vpop.f32.mrb[0].mxu0
    %v797 = vadd.f32 0.0, %v796
    %798 = vmatprep.mubr.f32.mxu0 0.0
    %799 = vmatmul.mubr.f32.gmra.mrb[0].mxu0 0.0
    %v800 = vpop.f32.mrb[0].mxu0
    %v801 = vadd.f32 0.0, %v800
    %v802 = vpop.f32.mrb[0].mxu0
    %v803 = vadd.f32 0.0, %v802
    %804 = vdwg.mxu0
    %v805 = vadd.f32 %v332, %v718
    %v806 = vadd.f32 %v334, %v720
    %v807 = vadd.f32 %v493, %v795
    %v808 = vadd.f32 %v495, %v797
    %v809 = vadd.f32 %v338, %v724
    %v810 = vadd.f32 %v340, %v726
    %v811 = vadd.f32 %v499, %v801
    %v812 = vadd.f32 %v501, %v803
    %v813 = vxor.u32 %v805, 2147483648
    %v814 = vxor.u32 %v809, 2147483648
    %v815 = vmul.f32 %v813, 1.442695
    %v816 = vpow.pop %v815
    %v817 = vmul.f32 %v814, 1.442695
    %v818 = vpow.pop %v817
    %v819 = vadd.f32 %v816, 1.0
    %v820 = vadd.f32 %v818, 1.0
    %v821 = vrcp.pop %v819
    %v822 = vmul.f32 1.0, %v821
    %v823 = vrcp.pop %v820
    %v824 = vmul.f32 1.0, %v823
    %v825 = vxor.u32 %v806, 2147483648
    %v826 = vxor.u32 %v810, 2147483648
    %v827 = vmul.f32 %v825, 1.442695
    %v828 = vpow.pop %v827
    %v829 = vmul.f32 %v826, 1.442695
    %v830 = vpow.pop %v829
    %v831 = vadd.f32 %v828, 1.0
    %v832 = vadd.f32 %v830, 1.0
    %v833 = vrcp.pop %v831
    %v834 = vmul.f32 1.0, %v833
    %v835 = vrcp.pop %v832
    %v836 = vmul.f32 1.0, %v835
    %v837 = vtanh.pop %v807
    %v838 = vtanh.pop %v811
    %v839 = vxor.u32 %v808, 2147483648
    %v840 = vxor.u32 %v812, 2147483648
    %v841 = vmul.f32 %v839, 1.442695
    %v842 = vpow.pop %v841
    %v843 = vmul.f32 %v840, 1.442695
    %v844 = vpow.pop %v843
    %v845 = vadd.f32 %v842, 1.0
    %v846 = vadd.f32 %v844, 1.0
    %v847 = vrcp.pop %v845
    %v848 = vmul.f32 1.0, %v847
    %v849 = vrcp.pop %v846
    %v850 = vmul.f32 1.0, %v849
    %v851 = vmul.f32 %v834, 0.0
    %v852 = vmul.f32 %v836, 0.0
    %v853 = vmul.f32 %v822, %v837
    %v854 = vmul.f32 %v824, %v838
    %v855 = vadd.f32 %v851, %v853
    %v856 = vadd.f32 %v852, %v854
    %v857 = vtanh.pop %v855
    %v858 = vtanh.pop %v856
    %v859 = vmul.f32 %v848, %v857
    %v860 = vmul.f32 %v850, %v858
    %861 = vmatprep.subr.mxu0 %v588
    %862 = vmatpush1.msra.mxu0 %v587
    %863 = vmatprep.subr.mxu0 %v592
    %864 = vmatpush1.msra.mxu0 %v591
    %865 = vmatprep.subr.mxu0 %v596
    %866 = vmatpush1.msra.mxu0 %v595
    %867 = vmatprep.subr.mxu0 %v600
    %868 = vmatpush1.msra.mxu0 %v599
    %869 = vmatprep.subr.mxu0 %v604
    %870 = vmatpush1.msra.mxu0 %v603
    %871 = vmatprep.subr.mxu0 %v608
    %872 = vmatpush1.msra.mxu0 %v607
    %873 = vmatprep.subr.mxu0 %v612
    %874 = vmatpush1.msra.mxu0 %v611
    %875 = vmatprep.subr.mxu0 %v616
    %876 = vmatpush1.msra.mxu0 %v615
    %877 = vmatprep.subr.mxu0 %v620
    %878 = vmatpush1.msra.mxu0 %v619
    %879 = vmatprep.subr.mxu0 %v624
    %880 = vmatpush1.msra.mxu0 %v623
    %881 = vmatprep.subr.mxu0 %v628
    %882 = vmatpush1.msra.mxu0 %v627
    %883 = vmatprep.subr.mxu0 %v632
    %884 = vmatpush1.msra.mxu0 %v631
    %885 = vmatprep.subr.mxu0 %v636
    %886 = vmatpush1.msra.mxu0 %v635
    %887 = vmatprep.subr.mxu0 %v640
    %888 = vmatpush1.msra.mxu0 %v639
    %889 = vmatprep.subr.mxu0 %v644
    %890 = vmatpush1.msra.mxu0 %v643
    %891 = vmatprep.subr.mxu0 %v648
    %892 = vmatpush1.msra.mxu0 %v647
    %893 = vmatprep.subr.mxu0 0.0
    %894 = vmatpush1.msra.mxu0 0.0
    %895 = vmatprep.subr.mxu0 0.0
    %896 = vmatpush1.msra.mxu0 0.0
    %897 = vmatprep.subr.mxu0 0.0
    %898 = vmatpush1.msra.mxu0 0.0
    %899 = vmatprep.subr.mxu0 0.0
    %900 = vmatpush1.msra.mxu0 0.0
    %901 = vmatprep.subr.mxu0 0.0
    %902 = vmatpush1.msra.mxu0 0.0
    %903 = vmatprep.subr.mxu0 0.0
    %904 = vmatpush1.msra.mxu0 0.0
    %905 = vmatprep.subr.mxu0 0.0
    %906 = vmatpush1.msra.mxu0 0.0
    %907 = vmatprep.subr.mxu0 0.0
    %908 = vmatpush1.msra.mxu0 0.0
    %909 = vmatprep.subr.mxu0 0.0
    %910 = vmatpush1.msra.mxu0 0.0
    %911 = vmatprep.subr.mxu0 0.0
    %912 = vmatpush1.msra.mxu0 0.0
    %913 = vmatprep.subr.mxu0 0.0
    %914 = vmatpush1.msra.mxu0 0.0
    %915 = vmatprep.subr.mxu0 0.0
    %916 = vmatpush1.msra.mxu0 0.0
    %917 = vmatprep.subr.mxu0 0.0
    %918 = vmatpush1.msra.mxu0 0.0
    %919 = vmatprep.subr.mxu0 0.0
    %920 = vmatpush1.msra.mxu0 0.0
    %921 = vmatprep.subr.mxu0 0.0
    %922 = vmatpush1.msra.mxu0 0.0
    %923 = vmatprep.subr.mxu0 0.0
    %924 = vmatpush1.msra.mxu0 0.0
    %925 = vmatprep.mubr.f32.mxu0 0.0
    %926 = vmatmul.mubr.f32.gmra.mrb[0].mxu0 %v859
    %v927 = vpop.f32.mrb[0].mxu0
    %v928 = vadd.f32 0.0, %v927
    %v929 = vpop.f32.mrb[0].mxu0
    %v930 = vadd.f32 0.0, %v929
    %931 = vmatprep.mubr.f32.mxu0 0.0
    %932 = vmatmul.mubr.f32.gmra.mrb[0].mxu0 %v860
    %v933 = vpop.f32.mrb[0].mxu0
    %v934 = vadd.f32 0.0, %v933
    %v935 = vpop.f32.mrb[0].mxu0
    %v936 = vadd.f32 0.0, %v935
    %937 = vdwg.mxu0
    %938 = vmatprep.subr.mxu0 %v590
    %939 = vmatpush1.msra.mxu0 %v589
    %940 = vmatprep.subr.mxu0 %v594
    %941 = vmatpush1.msra.mxu0 %v593
    %942 = vmatprep.subr.mxu0 %v598
    %943 = vmatpush1.msra.mxu0 %v597
    %944 = vmatprep.subr.mxu0 %v602
    %945 = vmatpush1.msra.mxu0 %v601
    %946 = vmatprep.subr.mxu0 %v606
    %947 = vmatpush1.msra.mxu0 %v605
    %948 = vmatprep.subr.mxu0 %v610
    %949 = vmatpush1.msra.mxu0 %v609
    %950 = vmatprep.subr.mxu0 %v614
    %951 = vmatpush1.msra.mxu0 %v613
    %952 = vmatprep.subr.mxu0 %v618
    %953 = vmatpush1.msra.mxu0 %v617
    %954 = vmatprep.subr.mxu0 %v622
    %955 = vmatpush1.msra.mxu0 %v621
    %956 = vmatprep.subr.mxu0 %v626
    %957 = vmatpush1.msra.mxu0 %v625
    %958 = vmatprep.subr.mxu0 %v630
    %959 = vmatpush1.msra.mxu0 %v629
    %960 = vmatprep.subr.mxu0 %v634
    %961 = vmatpush1.msra.mxu0 %v633
    %962 = vmatprep.subr.mxu0 %v638
    %963 = vmatpush1.msra.mxu0 %v637
    %964 = vmatprep.subr.mxu0 %v642
    %965 = vmatpush1.msra.mxu0 %v641
    %966 = vmatprep.subr.mxu0 %v646
    %967 = vmatpush1.msra.mxu0 %v645
    %968 = vmatprep.subr.mxu0 %v650
    %969 = vmatpush1.msra.mxu0 %v649
    %970 = vmatprep.subr.mxu0 0.0
    %971 = vmatpush1.msra.mxu0 0.0
    %972 = vmatprep.subr.mxu0 0.0
    %973 = vmatpush1.msra.mxu0 0.0
    %974 = vmatprep.subr.mxu0 0.0
    %975 = vmatpush1.msra.mxu0 0.0
    %976 = vmatprep.subr.mxu0 0.0
    %977 = vmatpush1.msra.mxu0 0.0
    %978 = vmatprep.subr.mxu0 0.0
    %979 = vmatpush1.msra.mxu0 0.0
    %980 = vmatprep.subr.mxu0 0.0
    %981 = vmatpush1.msra.mxu0 0.0
    %982 = vmatprep.subr.mxu0 0.0
    %983 = vmatpush1.msra.mxu0 0.0
    %984 = vmatprep.subr.mxu0 0.0
    %985 = vmatpush1.msra.mxu0 0.0
    %986 = vmatprep.subr.mxu0 0.0
    %987 = vmatpush1.msra.mxu0 0.0
    %988 = vmatprep.subr.mxu0 0.0
    %989 = vmatpush1.msra.mxu0 0.0
    %990 = vmatprep.subr.mxu0 0.0
    %991 = vmatpush1.msra.mxu0 0.0
    %992 = vmatprep.subr.mxu0 0.0
    %993 = vmatpush1.msra.mxu0 0.0
    %994 = vmatprep.subr.mxu0 0.0
    %995 = vmatpush1.msra.mxu0 0.0
    %996 = vmatprep.subr.mxu0 0.0
    %997 = vmatpush1.msra.mxu0 0.0
    %998 = vmatprep.subr.mxu0 0.0
    %999 = vmatpush1.msra.mxu0 0.0
    %1000 = vmatprep.subr.mxu0 0.0
    %1001 = vmatpush1.msra.mxu0 0.0
    %1002 = vmatprep.mubr.f32.mxu0 0.0
    %1003 = vmatmul.mubr.f32.gmra.mrb[0].mxu0 %v859
    %v1004 = vpop.f32.mrb[0].mxu0
    %v1005 = vadd.f32 0.0, %v1004
    %v1006 = vpop.f32.mrb[0].mxu0
    %v1007 = vadd.f32 0.0, %v1006
    %1008 = vmatprep.mubr.f32.mxu0 0.0
    %1009 = vmatmul.mubr.f32.gmra.mrb[0].mxu0 %v860
    %v1010 = vpop.f32.mrb[0].mxu0
    %v1011 = vadd.f32 0.0, %v1010
    %v1012 = vpop.f32.mrb[0].mxu0
    %v1013 = vadd.f32 0.0, %v1012
    %1014 = vdwg.mxu0
    %v1015 = vadd.f32 %v344, %v928
    %v1016 = vadd.f32 %v346, %v930
    %v1017 = vadd.f32 %v505, %v1005
    %v1018 = vadd.f32 %v507, %v1007
    %v1019 = vadd.f32 %v350, %v934
    %v1020 = vadd.f32 %v352, %v936
    %v1021 = vadd.f32 %v511, %v1011
    %v1022 = vadd.f32 %v513, %v1013
    %v1023 = vxor.u32 %v1015, 2147483648
    %v1024 = vxor.u32 %v1019, 2147483648
    %v1025 = vmul.f32 %v1023, 1.442695
    %v1026 = vpow.pop %v1025
    %v1027 = vmul.f32 %v1024, 1.442695
    %v1028 = vpow.pop %v1027
    %v1029 = vadd.f32 %v1026, 1.0
    %v1030 = vadd.f32 %v1028, 1.0
    %v1031 = vrcp.pop %v1029
    %v1032 = vmul.f32 1.0, %v1031
    %v1033 = vrcp.pop %v1030
    %v1034 = vmul.f32 1.0, %v1033
    %v1035 = vxor.u32 %v1016, 2147483648
    %v1036 = vxor.u32 %v1020, 2147483648
    %v1037 = vmul.f32 %v1035, 1.442695
    %v1038 = vpow.pop %v1037
    %v1039 = vmul.f32 %v1036, 1.442695
    %v1040 = vpow.pop %v1039
    %v1041 = vadd.f32 %v1038, 1.0
    %v1042 = vadd.f32 %v1040, 1.0
    %v1043 = vrcp.pop %v1041
    %v1044 = vmul.f32 1.0, %v1043
    %v1045 = vrcp.pop %v1042
    %v1046 = vmul.f32 1.0, %v1045
    %v1047 = vtanh.pop %v1017
    %v1048 = vtanh.pop %v1021
    %v1049 = vxor.u32 %v1018, 2147483648
    %v1050 = vxor.u32 %v1022, 2147483648
    %v1051 = vmul.f32 %v1049, 1.442695
    %v1052 = vpow.pop %v1051
    %v1053 = vmul.f32 %v1050, 1.442695
    %v1054 = vpow.pop %v1053
    %v1055 = vadd.f32 %v1052, 1.0
    %v1056 = vadd.f32 %v1054, 1.0
    %v1057 = vrcp.pop %v1055
    %v1058 = vmul.f32 1.0, %v1057
    %v1059 = vrcp.pop %v1056
    %v1060 = vmul.f32 1.0, %v1059
    %v1061 = vmul.f32 %v1044, %v855
    %v1062 = vmul.f32 %v1046, %v856
    %v1063 = vmul.f32 %v1032, %v1047
    %v1064 = vmul.f32 %v1034, %v1048
    %v1065 = vadd.f32 %v1061, %v1063
    %v1066 = vadd.f32 %v1062, %v1064
    %v1067 = vtanh.pop %v1065
    %v1068 = vtanh.pop %v1066
    %v1069 = vmul.f32 %v1058, %v1067
    %v1070 = vmul.f32 %v1060, %v1068
    %1071 = vmatprep.subr.mxu0 %v588
    %1072 = vmatpush1.msra.mxu0 %v587
    %1073 = vmatprep.subr.mxu0 %v592
    %1074 = vmatpush1.msra.mxu0 %v591
    %1075 = vmatprep.subr.mxu0 %v596
    %1076 = vmatpush1.msra.mxu0 %v595
    %1077 = vmatprep.subr.mxu0 %v600
    %1078 = vmatpush1.msra.mxu0 %v599
    %1079 = vmatprep.subr.mxu0 %v604
    %1080 = vmatpush1.msra.mxu0 %v603
    %1081 = vmatprep.subr.mxu0 %v608
    %1082 = vmatpush1.msra.mxu0 %v607
    %1083 = vmatprep.subr.mxu0 %v612
    %1084 = vmatpush1.msra.mxu0 %v611
    %1085 = vmatprep.subr.mxu0 %v616
    %1086 = vmatpush1.msra.mxu0 %v615
    %1087 = vmatprep.subr.mxu0 %v620
    %1088 = vmatpush1.msra.mxu0 %v619
    %1089 = vmatprep.subr.mxu0 %v624
    %1090 = vmatpush1.msra.mxu0 %v623
    %1091 = vmatprep.subr.mxu0 %v628
    %1092 = vmatpush1.msra.mxu0 %v627
    %1093 = vmatprep.subr.mxu0 %v632
    %1094 = vmatpush1.msra.mxu0 %v631
    %1095 = vmatprep.subr.mxu0 %v636
    %1096 = vmatpush1.msra.mxu0 %v635
    %1097 = vmatprep.subr.mxu0 %v640
    %1098 = vmatpush1.msra.mxu0 %v639
    %1099 = vmatprep.subr.mxu0 %v644
    %1100 = vmatpush1.msra.mxu0 %v643
    %1101 = vmatprep.subr.mxu0 %v648
    %1102 = vmatpush1.msra.mxu0 %v647
    %1103 = vmatprep.subr.mxu0 0.0
    %1104 = vmatpush1.msra.mxu0 0.0
    %1105 = vmatprep.subr.mxu0 0.0
    %1106 = vmatpush1.msra.mxu0 0.0
    %1107 = vmatprep.subr.mxu0 0.0
    %1108 = vmatpush1.msra.mxu0 0.0
    %1109 = vmatprep.subr.mxu0 0.0
    %1110 = vmatpush1.msra.mxu0 0.0
    %1111 = vmatprep.subr.mxu0 0.0
    %1112 = vmatpush1.msra.mxu0 0.0
    %1113 = vmatprep.subr.mxu0 0.0
    %1114 = vmatpush1.msra.mxu0 0.0
    %1115 = vmatprep.subr.mxu0 0.0
    %1116 = vmatpush1.msra.mxu0 0.0
    %1117 = vmatprep.subr.mxu0 0.0
    %1118 = vmatpush1.msra.mxu0 0.0
    %1119 = vmatprep.subr.mxu0 0.0
    %1120 = vmatpush1.msra.mxu0 0.0
    %1121 = vmatprep.subr.mxu0 0.0
    %1122 = vmatpush1.msra.mxu0 0.0
    %1123 = vmatprep.subr.mxu0 0.0
    %1124 = vmatpush1.msra.mxu0 0.0
    %1125 = vmatprep.subr.mxu0 0.0
    %1126 = vmatpush1.msra.mxu0 0.0
    %1127 = vmatprep.subr.mxu0 0.0
    %1128 = vmatpush1.msra.mxu0 0.0
    %1129 = vmatprep.subr.mxu0 0.0
    %1130 = vmatpush1.msra.mxu0 0.0
    %1131 = vmatprep.subr.mxu0 0.0
    %1132 = vmatpush1.msra.mxu0 0.0
    %1133 = vmatprep.subr.mxu0 0.0
    %1134 = vmatpush1.msra.mxu0 0.0
    %1135 = vmatprep.mubr.f32.mxu0 0.0
    %1136 = vmatmul.mubr.f32.gmra.mrb[0].mxu0 %v1069
    %v1137 = vpop.f32.mrb[0].mxu0
    %v1138 = vadd.f32 0.0, %v1137
    %v1139 = vpop.f32.mrb[0].mxu0
    %v1140 = vadd.f32 0.0, %v1139
    %1141 = vmatprep.mubr.f32.mxu0 0.0
    %1142 = vmatmul.mubr.f32.gmra.mrb[0].mxu0 %v1070
    %v1143 = vpop.f32.mrb[0].mxu0
    %v1144 = vadd.f32 0.0, %v1143
    %v1145 = vpop.f32.mrb[0].mxu0
    %v1146 = vadd.f32 0.0, %v1145
    %1147 = vdwg.mxu0
    %1148 = vmatprep.subr.mxu0 %v590
    %1149 = vmatpush1.msra.mxu0 %v589
    %1150 = vmatprep.subr.mxu0 %v594
    %1151 = vmatpush1.msra.mxu0 %v593
    %1152 = vmatprep.subr.mxu0 %v598
    %1153 = vmatpush1.msra.mxu0 %v597
    %1154 = vmatprep.subr.mxu0 %v602
    %1155 = vmatpush1.msra.mxu0 %v601
    %1156 = vmatprep.subr.mxu0 %v606
    %1157 = vmatpush1.msra.mxu0 %v605
    %1158 = vmatprep.subr.mxu0 %v610
    %1159 = vmatpush1.msra.mxu0 %v609
    %1160 = vmatprep.subr.mxu0 %v614
    %1161 = vmatpush1.msra.mxu0 %v613
    %1162 = vmatprep.subr.mxu0 %v618
    %1163 = vmatpush1.msra.mxu0 %v617
    %1164 = vmatprep.subr.mxu0 %v622
    %1165 = vmatpush1.msra.mxu0 %v621
    %1166 = vmatprep.subr.mxu0 %v626
    %1167 = vmatpush1.msra.mxu0 %v625
    %1168 = vmatprep.subr.mxu0 %v630
    %1169 = vmatpush1.msra.mxu0 %v629
    %1170 = vmatprep.subr.mxu0 %v634
    %1171 = vmatpush1.msra.mxu0 %v633
    %1172 = vmatprep.subr.mxu0 %v638
    %1173 = vmatpush1.msra.mxu0 %v637
    %1174 = vmatprep.subr.mxu0 %v642
    %1175 = vmatpush1.msra.mxu0 %v641
    %1176 = vmatprep.subr.mxu0 %v646
    %1177 = vmatpush1.msra.mxu0 %v645
    %1178 = vmatprep.subr.mxu0 %v650
    %1179 = vmatpush1.msra.mxu0 %v649
    %1180 = vmatprep.subr.mxu0 0.0
    %1181 = vmatpush1.msra.mxu0 0.0
    %1182 = vmatprep.subr.mxu0 0.0
    %1183 = vmatpush1.msra.mxu0 0.0
    %1184 = vmatprep.subr.mxu0 0.0
    %1185 = vmatpush1.msra.mxu0 0.0
    %1186 = vmatprep.subr.mxu0 0.0
    %1187 = vmatpush1.msra.mxu0 0.0
    %1188 = vmatprep.subr.mxu0 0.0
    %1189 = vmatpush1.msra.mxu0 0.0
    %1190 = vmatprep.subr.mxu0 0.0
    %1191 = vmatpush1.msra.mxu0 0.0
    %1192 = vmatprep.subr.mxu0 0.0
    %1193 = vmatpush1.msra.mxu0 0.0
    %1194 = vmatprep.subr.mxu0 0.0
    %1195 = vmatpush1.msra.mxu0 0.0
    %1196 = vmatprep.subr.mxu0 0.0
    %1197 = vmatpush1.msra.mxu0 0.0
    %1198 = vmatprep.subr.mxu0 0.0
    %1199 = vmatpush1.msra.mxu0 0.0
    %1200 = vmatprep.subr.mxu0 0.0
    %1201 = vmatpush1.msra.mxu0 0.0
    %1202 = vmatprep.subr.mxu0 0.0
    %1203 = vmatpush1.msra.mxu0 0.0
    %1204 = vmatprep.subr.mxu0 0.0
    %1205 = vmatpush1.msra.mxu0 0.0
    %1206 = vmatprep.subr.mxu0 0.0
    %1207 = vmatpush1.msra.mxu0 0.0
    %1208 = vmatprep.subr.mxu0 0.0
    %1209 = vmatpush1.msra.mxu0 0.0
    %1210 = vmatprep.subr.mxu0 0.0
    %1211 = vmatpush1.msra.mxu0 0.0
    %1212 = vmatprep.mubr.f32.mxu0 0.0
    %1213 = vmatmul.mubr.f32.gmra.mrb[0].mxu0 %v1069
    %v1214 = vpop.f32.mrb[0].mxu0
    %v1215 = vadd.f32 0.0, %v1214
    %v1216 = vpop.f32.mrb[0].mxu0
    %v1217 = vadd.f32 0.0, %v1216
    %1218 = vmatprep.mubr.f32.mxu0 0.0
    %1219 = vmatmul.mubr.f32.gmra.mrb[0].mxu0 %v1070
    %v1220 = vpop.f32.mrb[0].mxu0
    %v1221 = vadd.f32 0.0, %v1220
    %v1222 = vpop.f32.mrb[0].mxu0
    %v1223 = vadd.f32 0.0, %v1222
    %1224 = vdwg.mxu0
    %v1225 = vadd.f32 %v356, %v1138
    %v1226 = vadd.f32 %v358, %v1140
    %v1227 = vadd.f32 %v517, %v1215
    %v1228 = vadd.f32 %v519, %v1217
    %v1229 = vadd.f32 %v362, %v1144
    %v1230 = vadd.f32 %v364, %v1146
    %v1231 = vadd.f32 %v523, %v1221
    %v1232 = vadd.f32 %v525, %v1223
    %v1233 = vxor.u32 %v1225, 2147483648
    %v1234 = vxor.u32 %v1229, 2147483648
    %v1235 = vmul.f32 %v1233, 1.442695
    %v1236 = vpow.pop %v1235
    %v1237 = vmul.f32 %v1234, 1.442695
    %v1238 = vpow.pop %v1237
    %v1239 = vadd.f32 %v1236, 1.0
    %v1240 = vadd.f32 %v1238, 1.0
    %v1241 = vrcp.pop %v1239
    %v1242 = vmul.f32 1.0, %v1241
    %v1243 = vrcp.pop %v1240
    %v1244 = vmul.f32 1.0, %v1243
    %v1245 = vxor.u32 %v1226, 2147483648
    %v1246 = vxor.u32 %v1230, 2147483648
    %v1247 = vmul.f32 %v1245, 1.442695
    %v1248 = vpow.pop %v1247
    %v1249 = vmul.f32 %v1246, 1.442695
    %v1250 = vpow.pop %v1249
    %v1251 = vadd.f32 %v1248, 1.0
    %v1252 = vadd.f32 %v1250, 1.0
    %v1253 = vrcp.pop %v1251
    %v1254 = vmul.f32 1.0, %v1253
    %v1255 = vrcp.pop %v1252
    %v1256 = vmul.f32 1.0, %v1255
    %v1257 = vtanh.pop %v1227
    %v1258 = vtanh.pop %v1231
    %v1259 = vxor.u32 %v1228, 2147483648
    %v1260 = vxor.u32 %v1232, 2147483648
    %v1261 = vmul.f32 %v1259, 1.442695
    %v1262 = vpow.pop %v1261
    %v1263 = vmul.f32 %v1260, 1.442695
    %v1264 = vpow.pop %v1263
    %v1265 = vadd.f32 %v1262, 1.0
    %v1266 = vadd.f32 %v1264, 1.0
    %v1267 = vrcp.pop %v1265
    %v1268 = vmul.f32 1.0, %v1267
    %v1269 = vrcp.pop %v1266
    %v1270 = vmul.f32 1.0, %v1269
    %v1271 = vmul.f32 %v1254, %v1065
    %v1272 = vmul.f32 %v1256, %v1066
    %v1273 = vmul.f32 %v1242, %v1257
    %v1274 = vmul.f32 %v1244, %v1258
    %v1275 = vadd.f32 %v1271, %v1273
    %v1276 = vadd.f32 %v1272, %v1274
    %v1277 = vtanh.pop %v1275
    %v1278 = vtanh.pop %v1276
    %v1279 = vmul.f32 %v1268, %v1277
    %v1280 = vmul.f32 %v1270, %v1278
    %1281 = vmatprep.subr.mxu0 %v588
    %1282 = vmatpush1.msra.mxu0 %v587
    %1283 = vmatprep.subr.mxu0 %v592
    %1284 = vmatpush1.msra.mxu0 %v591
    %1285 = vmatprep.subr.mxu0 %v596
    %1286 = vmatpush1.msra.mxu0 %v595
    %1287 = vmatprep.subr.mxu0 %v600
    %1288 = vmatpush1.msra.mxu0 %v599
    %1289 = vmatprep.subr.mxu0 %v604
    %1290 = vmatpush1.msra.mxu0 %v603
    %1291 = vmatprep.subr.mxu0 %v608
    %1292 = vmatpush1.msra.mxu0 %v607
    %1293 = vmatprep.subr.mxu0 %v612
    %1294 = vmatpush1.msra.mxu0 %v611
    %1295 = vmatprep.subr.mxu0 %v616
    %1296 = vmatpush1.msra.mxu0 %v615
    %1297 = vmatprep.subr.mxu0 %v620
    %1298 = vmatpush1.msra.mxu0 %v619
    %1299 = vmatprep.subr.mxu0 %v624
    %1300 = vmatpush1.msra.mxu0 %v623
    %1301 = vmatprep.subr.mxu0 %v628
    %1302 = vmatpush1.msra.mxu0 %v627
    %1303 = vmatprep.subr.mxu0 %v632
    %1304 = vmatpush1.msra.mxu0 %v631
    %1305 = vmatprep.subr.mxu0 %v636
    %1306 = vmatpush1.msra.mxu0 %v635
    %1307 = vmatprep.subr.mxu0 %v640
    %1308 = vmatpush1.msra.mxu0 %v639
    %1309 = vmatprep.subr.mxu0 %v644
    %1310 = vmatpush1.msra.mxu0 %v643
    %1311 = vmatprep.subr.mxu0 %v648
    %1312 = vmatpush1.msra.mxu0 %v647
    %1313 = vmatprep.subr.mxu0 0.0
    %1314 = vmatpush1.msra.mxu0 0.0
    %1315 = vmatprep.subr.mxu0 0.0
    %1316 = vmatpush1.msra.mxu0 0.0
    %1317 = vmatprep.subr.mxu0 0.0
    %1318 = vmatpush1.msra.mxu0 0.0
    %1319 = vmatprep.subr.mxu0 0.0
    %1320 = vmatpush1.msra.mxu0 0.0
    %1321 = vmatprep.subr.mxu0 0.0
    %1322 = vmatpush1.msra.mxu0 0.0
    %1323 = vmatprep.subr.mxu0 0.0
    %1324 = vmatpush1.msra.mxu0 0.0
    %1325 = vmatprep.subr.mxu0 0.0
    %1326 = vmatpush1.msra.mxu0 0.0
    %1327 = vmatprep.subr.mxu0 0.0
    %1328 = vmatpush1.msra.mxu0 0.0
    %1329 = vmatprep.subr.mxu0 0.0
    %1330 = vmatpush1.msra.mxu0 0.0
    %1331 = vmatprep.subr.mxu0 0.0
    %1332 = vmatpush1.msra.mxu0 0.0
    %1333 = vmatprep.subr.mxu0 0.0
    %1334 = vmatpush1.msra.mxu0 0.0
    %1335 = vmatprep.subr.mxu0 0.0
    %1336 = vmatpush1.msra.mxu0 0.0
    %1337 = vmatprep.subr.mxu0 0.0
    %1338 = vmatpush1.msra.mxu0 0.0
    %1339 = vmatprep.subr.mxu0 0.0
    %1340 = vmatpush1.msra.mxu0 0.0
    %1341 = vmatprep.subr.mxu0 0.0
    %1342 = vmatpush1.msra.mxu0 0.0
    %1343 = vmatprep.subr.mxu0 0.0
    %1344 = vmatpush1.msra.mxu0 0.0
    %1345 = vmatprep.mubr.f32.mxu0 0.0
    %1346 = vmatmul.mubr.f32.gmra.mrb[0].mxu0 %v1279
    %v1347 = vpop.f32.mrb[0].mxu0
    %v1348 = vadd.f32 0.0, %v1347
    %v1349 = vpop.f32.mrb[0].mxu0
    %v1350 = vadd.f32 0.0, %v1349
    %1351 = vmatprep.mubr.f32.mxu0 0.0
    %1352 = vmatmul.mubr.f32.gmra.mrb[0].mxu0 %v1280
    %v1353 = vpop.f32.mrb[0].mxu0
    %v1354 = vadd.f32 0.0, %v1353
    %v1355 = vpop.f32.mrb[0].mxu0
    %v1356 = vadd.f32 0.0, %v1355
    %1357 = vdwg.mxu0
    %1358 = vmatprep.subr.mxu0 %v590
    %1359 = vmatpush1.msra.mxu0 %v589
    %1360 = vmatprep.subr.mxu0 %v594
    %1361 = vmatpush1.msra.mxu0 %v593
    %1362 = vmatprep.subr.mxu0 %v598
    %1363 = vmatpush1.msra.mxu0 %v597
    %1364 = vmatprep.subr.mxu0 %v602
    %1365 = vmatpush1.msra.mxu0 %v601
    %1366 = vmatprep.subr.mxu0 %v606
    %1367 = vmatpush1.msra.mxu0 %v605
    %1368 = vmatprep.subr.mxu0 %v610
    %1369 = vmatpush1.msra.mxu0 %v609
    %1370 = vmatprep.subr.mxu0 %v614
    %1371 = vmatpush1.msra.mxu0 %v613
    %1372 = vmatprep.subr.mxu0 %v618
    %1373 = vmatpush1.msra.mxu0 %v617
    %1374 = vmatprep.subr.mxu0 %v622
    %1375 = vmatpush1.msra.mxu0 %v621
    %1376 = vmatprep.subr.mxu0 %v626
    %1377 = vmatpush1.msra.mxu0 %v625
    %1378 = vmatprep.subr.mxu0 %v630
    %1379 = vmatpush1.msra.mxu0 %v629
    %1380 = vmatprep.subr.mxu0 %v634
    %1381 = vmatpush1.msra.mxu0 %v633
    %1382 = vmatprep.subr.mxu0 %v638
    %1383 = vmatpush1.msra.mxu0 %v637
    %1384 = vmatprep.subr.mxu0 %v642
    %1385 = vmatpush1.msra.mxu0 %v641
    %1386 = vmatprep.subr.mxu0 %v646
    %1387 = vmatpush1.msra.mxu0 %v645
    %1388 = vmatprep.subr.mxu0 %v650
    %1389 = vmatpush1.msra.mxu0 %v649
    %1390 = vmatprep.subr.mxu0 0.0
    %1391 = vmatpush1.msra.mxu0 0.0
    %1392 = vmatprep.subr.mxu0 0.0
    %1393 = vmatpush1.msra.mxu0 0.0
    %1394 = vmatprep.subr.mxu0 0.0
    %1395 = vmatpush1.msra.mxu0 0.0
    %1396 = vmatprep.subr.mxu0 0.0
    %1397 = vmatpush1.msra.mxu0 0.0
    %1398 = vmatprep.subr.mxu0 0.0
    %1399 = vmatpush1.msra.mxu0 0.0
    %1400 = vmatprep.subr.mxu0 0.0
    %1401 = vmatpush1.msra.mxu0 0.0
    %1402 = vmatprep.subr.mxu0 0.0
    %1403 = vmatpush1.msra.mxu0 0.0
    %1404 = vmatprep.subr.mxu0 0.0
    %1405 = vmatpush1.msra.mxu0 0.0
    %1406 = vmatprep.subr.mxu0 0.0
    %1407 = vmatpush1.msra.mxu0 0.0
    %1408 = vmatprep.subr.mxu0 0.0
    %1409 = vmatpush1.msra.mxu0 0.0
    %1410 = vmatprep.subr.mxu0 0.0
    %1411 = vmatpush1.msra.mxu0 0.0
    %1412 = vmatprep.subr.mxu0 0.0
    %1413 = vmatpush1.msra.mxu0 0.0
    %1414 = vmatprep.subr.mxu0 0.0
    %1415 = vmatpush1.msra.mxu0 0.0
    %1416 = vmatprep.subr.mxu0 0.0
    %1417 = vmatpush1.msra.mxu0 0.0
    %1418 = vmatprep.subr.mxu0 0.0
    %1419 = vmatpush1.msra.mxu0 0.0
    %1420 = vmatprep.subr.mxu0 0.0
    %1421 = vmatpush1.msra.mxu0 0.0
    %1422 = vmatprep.mubr.f32.mxu0 0.0
    %1423 = vmatmul.mubr.f32.gmra.mrb[0].mxu0 %v1279
    %v1424 = vpop.f32.mrb[0].mxu0
    %v1425 = vadd.f32 0.0, %v1424
    %v1426 = vpop.f32.mrb[0].mxu0
    %v1427 = vadd.f32 0.0, %v1426
    %1428 = vmatprep.mubr.f32.mxu0 0.0
    %1429 = vmatmul.mubr.f32.gmra.mrb[0].mxu0 %v1280
    %v1430 = vpop.f32.mrb[0].mxu0
    %v1431 = vadd.f32 0.0, %v1430
    %v1432 = vpop.f32.mrb[0].mxu0
    %v1433 = vadd.f32 0.0, %v1432
    %1434 = vdwg.mxu0
    %v1435 = vadd.f32 %v368, %v1348
    %v1436 = vadd.f32 %v370, %v1350
    %v1437 = vadd.f32 %v529, %v1425
    %v1438 = vadd.f32 %v531, %v1427
    %v1439 = vadd.f32 %v374, %v1354
    %v1440 = vadd.f32 %v376, %v1356
    %v1441 = vadd.f32 %v535, %v1431
    %v1442 = vadd.f32 %v537, %v1433
    %v1443 = vxor.u32 %v1435, 2147483648
    %v1444 = vxor.u32 %v1439, 2147483648
    %v1445 = vmul.f32 %v1443, 1.442695
    %v1446 = vpow.pop %v1445
    %v1447 = vmul.f32 %v1444, 1.442695
    %v1448 = vpow.pop %v1447
    %v1449 = vadd.f32 %v1446, 1.0
    %v1450 = vadd.f32 %v1448, 1.0
    %v1451 = vrcp.pop %v1449
    %v1452 = vmul.f32 1.0, %v1451
    %v1453 = vrcp.pop %v1450
    %v1454 = vmul.f32 1.0, %v1453
    %v1455 = vxor.u32 %v1436, 2147483648
    %v1456 = vxor.u32 %v1440, 2147483648
    %v1457 = vmul.f32 %v1455, 1.442695
    %v1458 = vpow.pop %v1457
    %v1459 = vmul.f32 %v1456, 1.442695
    %v1460 = vpow.pop %v1459
    %v1461 = vadd.f32 %v1458, 1.0
    %v1462 = vadd.f32 %v1460, 1.0
    %v1463 = vrcp.pop %v1461
    %v1464 = vmul.f32 1.0, %v1463
    %v1465 = vrcp.pop %v1462
    %v1466 = vmul.f32 1.0, %v1465
    %v1467 = vtanh.pop %v1437
    %v1468 = vtanh.pop %v1441
    %v1469 = vxor.u32 %v1438, 2147483648
    %v1470 = vxor.u32 %v1442, 2147483648
    %v1471 = vmul.f32 %v1469, 1.442695
    %v1472 = vpow.pop %v1471
    %v1473 = vmul.f32 %v1470, 1.442695
    %v1474 = vpow.pop %v1473
    %v1475 = vadd.f32 %v1472, 1.0
    %v1476 = vadd.f32 %v1474, 1.0
    %v1477 = vrcp.pop %v1475
    %v1478 = vmul.f32 1.0, %v1477
    %v1479 = vrcp.pop %v1476
    %v1480 = vmul.f32 1.0, %v1479
    %v1481 = vmul.f32 %v1464, %v1275
    %v1482 = vmul.f32 %v1466, %v1276
    %v1483 = vmul.f32 %v1452, %v1467
    %v1484 = vmul.f32 %v1454, %v1468
    %v1485 = vadd.f32 %v1481, %v1483
    %v1486 = vadd.f32 %v1482, %v1484
    %v1487 = vtanh.pop %v1485
    %v1488 = vtanh.pop %v1486
    %v1489 = vmul.f32 %v1478, %v1487
    %v1490 = vmul.f32 %v1480, %v1488
    %1491 = vmatprep.subr.mxu0 %v588
    %1492 = vmatpush1.msra.mxu0 %v587
    %1493 = vmatprep.subr.mxu0 %v592
    %1494 = vmatpush1.msra.mxu0 %v591
    %1495 = vmatprep.subr.mxu0 %v596
    %1496 = vmatpush1.msra.mxu0 %v595
    %1497 = vmatprep.subr.mxu0 %v600
    %1498 = vmatpush1.msra.mxu0 %v599
    %1499 = vmatprep.subr.mxu0 %v604
    %1500 = vmatpush1.msra.mxu0 %v603
    %1501 = vmatprep.subr.mxu0 %v608
    %1502 = vmatpush1.msra.mxu0 %v607
    %1503 = vmatprep.subr.mxu0 %v612
    %1504 = vmatpush1.msra.mxu0 %v611
    %1505 = vmatprep.subr.mxu0 %v616
    %1506 = vmatpush1.msra.mxu0 %v615
    %1507 = vmatprep.subr.mxu0 %v620
    %1508 = vmatpush1.msra.mxu0 %v619
    %1509 = vmatprep.subr.mxu0 %v624
    %1510 = vmatpush1.msra.mxu0 %v623
    %1511 = vmatprep.subr.mxu0 %v628
    %1512 = vmatpush1.msra.mxu0 %v627
    %1513 = vmatprep.subr.mxu0 %v632
    %1514 = vmatpush1.msra.mxu0 %v631
    %1515 = vmatprep.subr.mxu0 %v636
    %1516 = vmatpush1.msra.mxu0 %v635
    %1517 = vmatprep.subr.mxu0 %v640
    %1518 = vmatpush1.msra.mxu0 %v639
    %1519 = vmatprep.subr.mxu0 %v644
    %1520 = vmatpush1.msra.mxu0 %v643
    %1521 = vmatprep.subr.mxu0 %v648
    %1522 = vmatpush1.msra.mxu0 %v647
    %1523 = vmatprep.subr.mxu0 0.0
    %1524 = vmatpush1.msra.mxu0 0.0
    %1525 = vmatprep.subr.mxu0 0.0
    %1526 = vmatpush1.msra.mxu0 0.0
    %1527 = vmatprep.subr.mxu0 0.0
    %1528 = vmatpush1.msra.mxu0 0.0
    %1529 = vmatprep.subr.mxu0 0.0
    %1530 = vmatpush1.msra.mxu0 0.0
    %1531 = vmatprep.subr.mxu0 0.0
    %1532 = vmatpush1.msra.mxu0 0.0
    %1533 = vmatprep.subr.mxu0 0.0
    %1534 = vmatpush1.msra.mxu0 0.0
    %1535 = vmatprep.subr.mxu0 0.0
    %1536 = vmatpush1.msra.mxu0 0.0
    %1537 = vmatprep.subr.mxu0 0.0
    %1538 = vmatpush1.msra.mxu0 0.0
    %1539 = vmatprep.subr.mxu0 0.0
    %1540 = vmatpush1.msra.mxu0 0.0
    %1541 = vmatprep.subr.mxu0 0.0
    %1542 = vmatpush1.msra.mxu0 0.0
    %1543 = vmatprep.subr.mxu0 0.0
    %1544 = vmatpush1.msra.mxu0 0.0
    %1545 = vmatprep.subr.mxu0 0.0
    %1546 = vmatpush1.msra.mxu0 0.0
    %1547 = vmatprep.subr.mxu0 0.0
    %1548 = vmatpush1.msra.mxu0 0.0
    %1549 = vmatprep.subr.mxu0 0.0
    %1550 = vmatpush1.msra.mxu0 0.0
    %1551 = vmatprep.subr.mxu0 0.0
    %1552 = vmatpush1.msra.mxu0 0.0
    %1553 = vmatprep.subr.mxu0 0.0
    %1554 = vmatpush1.msra.mxu0 0.0
    %1555 = vmatprep.mubr.f32.mxu0 0.0
    %1556 = vmatmul.mubr.f32.gmra.mrb[0].mxu0 %v1489
    %v1557 = vpop.f32.mrb[0].mxu0
    %v1558 = vadd.f32 0.0, %v1557
    %v1559 = vpop.f32.mrb[0].mxu0
    %v1560 = vadd.f32 0.0, %v1559
    %1561 = vmatprep.mubr.f32.mxu0 0.0
    %1562 = vmatmul.mubr.f32.gmra.mrb[0].mxu0 %v1490
    %v1563 = vpop.f32.mrb[0].mxu0
    %v1564 = vadd.f32 0.0, %v1563
    %v1565 = vpop.f32.mrb[0].mxu0
    %v1566 = vadd.f32 0.0, %v1565
    %1567 = vdwg.mxu0
    %1568 = vmatprep.subr.mxu0 %v590
    %1569 = vmatpush1.msra.mxu0 %v589
    %1570 = vmatprep.subr.mxu0 %v594
    %1571 = vmatpush1.msra.mxu0 %v593
    %1572 = vmatprep.subr.mxu0 %v598
    %1573 = vmatpush1.msra.mxu0 %v597
    %1574 = vmatprep.subr.mxu0 %v602
    %1575 = vmatpush1.msra.mxu0 %v601
    %1576 = vmatprep.subr.mxu0 %v606
    %1577 = vmatpush1.msra.mxu0 %v605
    %1578 = vmatprep.subr.mxu0 %v610
    %1579 = vmatpush1.msra.mxu0 %v609
    %1580 = vmatprep.subr.mxu0 %v614
    %1581 = vmatpush1.msra.mxu0 %v613
    %1582 = vmatprep.subr.mxu0 %v618
    %1583 = vmatpush1.msra.mxu0 %v617
    %1584 = vmatprep.subr.mxu0 %v622
    %1585 = vmatpush1.msra.mxu0 %v621
    %1586 = vmatprep.subr.mxu0 %v626
    %1587 = vmatpush1.msra.mxu0 %v625
    %1588 = vmatprep.subr.mxu0 %v630
    %1589 = vmatpush1.msra.mxu0 %v629
    %1590 = vmatprep.subr.mxu0 %v634
    %1591 = vmatpush1.msra.mxu0 %v633
    %1592 = vmatprep.subr.mxu0 %v638
    %1593 = vmatpush1.msra.mxu0 %v637
    %1594 = vmatprep.subr.mxu0 %v642
    %1595 = vmatpush1.msra.mxu0 %v641
    %1596 = vmatprep.subr.mxu0 %v646
    %1597 = vmatpush1.msra.mxu0 %v645
    %1598 = vmatprep.subr.mxu0 %v650
    %1599 = vmatpush1.msra.mxu0 %v649
    %1600 = vmatprep.subr.mxu0 0.0
    %1601 = vmatpush1.msra.mxu0 0.0
    %1602 = vmatprep.subr.mxu0 0.0
    %1603 = vmatpush1.msra.mxu0 0.0
    %1604 = vmatprep.subr.mxu0 0.0
    %1605 = vmatpush1.msra.mxu0 0.0
    %1606 = vmatprep.subr.mxu0 0.0
    %1607 = vmatpush1.msra.mxu0 0.0
    %1608 = vmatprep.subr.mxu0 0.0
    %1609 = vmatpush1.msra.mxu0 0.0
    %1610 = vmatprep.subr.mxu0 0.0
    %1611 = vmatpush1.msra.mxu0 0.0
    %1612 = vmatprep.subr.mxu0 0.0
    %1613 = vmatpush1.msra.mxu0 0.0
    %1614 = vmatprep.subr.mxu0 0.0
    %1615 = vmatpush1.msra.mxu0 0.0
    %1616 = vmatprep.subr.mxu0 0.0
    %1617 = vmatpush1.msra.mxu0 0.0
    %1618 = vmatprep.subr.mxu0 0.0
    %1619 = vmatpush1.msra.mxu0 0.0
    %1620 = vmatprep.subr.mxu0 0.0
    %1621 = vmatpush1.msra.mxu0 0.0
    %1622 = vmatprep.subr.mxu0 0.0
    %1623 = vmatpush1.msra.mxu0 0.0
    %1624 = vmatprep.subr.mxu0 0.0
    %1625 = vmatpush1.msra.mxu0 0.0
    %1626 = vmatprep.subr.mxu0 0.0
    %1627 = vmatpush1.msra.mxu0 0.0
    %1628 = vmatprep.subr.mxu0 0.0
    %1629 = vmatpush1.msra.mxu0 0.0
    %1630 = vmatprep.subr.mxu0 0.0
    %1631 = vmatpush1.msra.mxu0 0.0
    %1632 = vmatprep.mubr.f32.mxu0 0.0
    %1633 = vmatmul.mubr.f32.gmra.mrb[0].mxu0 %v1489
    %v1634 = vpop.f32.mrb[0].mxu0
    %v1635 = vadd.f32 0.0, %v1634
    %v1636 = vpop.f32.mrb[0].mxu0
    %v1637 = vadd.f32 0.0, %v1636
    %1638 = vmatprep.mubr.f32.mxu0 0.0
    %1639 = vmatmul.mubr.f32.gmra.mrb[0].mxu0 %v1490
    %v1640 = vpop.f32.mrb[0].mxu0
    %v1641 = vadd.f32 0.0, %v1640
    %v1642 = vpop.f32.mrb[0].mxu0
    %v1643 = vadd.f32 0.0, %v1642
    %1644 = vdwg.mxu0
    %v1645 = vadd.f32 %v380, %v1558
    %v1646 = vadd.f32 %v382, %v1560
    %v1647 = vadd.f32 %v541, %v1635
    %v1648 = vadd.f32 %v543, %v1637
    %v1649 = vadd.f32 %v386, %v1564
    %v1650 = vadd.f32 %v388, %v1566
    %v1651 = vadd.f32 %v547, %v1641
    %v1652 = vadd.f32 %v549, %v1643
    %v1653 = vxor.u32 %v1645, 2147483648
    %v1654 = vxor.u32 %v1649, 2147483648
    %v1655 = vmul.f32 %v1653, 1.442695
    %v1656 = vpow.pop %v1655
    %v1657 = vmul.f32 %v1654, 1.442695
    %v1658 = vpow.pop %v1657
    %v1659 = vadd.f32 %v1656, 1.0
    %v1660 = vadd.f32 %v1658, 1.0
    %v1661 = vrcp.pop %v1659
    %v1662 = vmul.f32 1.0, %v1661
    %v1663 = vrcp.pop %v1660
    %v1664 = vmul.f32 1.0, %v1663
    %v1665 = vxor.u32 %v1646, 2147483648
    %v1666 = vxor.u32 %v1650, 2147483648
    %v1667 = vmul.f32 %v1665, 1.442695
    %v1668 = vpow.pop %v1667
    %v1669 = vmul.f32 %v1666, 1.442695
    %v1670 = vpow.pop %v1669
    %v1671 = vadd.f32 %v1668, 1.0
    %v1672 = vadd.f32 %v1670, 1.0
    %v1673 = vrcp.pop %v1671
    %v1674 = vmul.f32 1.0, %v1673
    %v1675 = vrcp.pop %v1672
    %v1676 = vmul.f32 1.0, %v1675
    %v1677 = vtanh.pop %v1647
    %v1678 = vtanh.pop %v1651
    %v1679 = vxor.u32 %v1648, 2147483648
    %v1680 = vxor.u32 %v1652, 2147483648
    %v1681 = vmul.f32 %v1679, 1.442695
    %v1682 = vpow.pop %v1681
    %v1683 = vmul.f32 %v1680, 1.442695
    %v1684 = vpow.pop %v1683
    %v1685 = vadd.f32 %v1682, 1.0
    %v1686 = vadd.f32 %v1684, 1.0
    %v1687 = vrcp.pop %v1685
    %v1688 = vmul.f32 1.0, %v1687
    %v1689 = vrcp.pop %v1686
    %v1690 = vmul.f32 1.0, %v1689
    %v1691 = vmul.f32 %v1674, %v1485
    %v1692 = vmul.f32 %v1676, %v1486
    %v1693 = vmul.f32 %v1662, %v1677
    %v1694 = vmul.f32 %v1664, %v1678
    %v1695 = vadd.f32 %v1691, %v1693
    %v1696 = vadd.f32 %v1692, %v1694
    %v1697 = vtanh.pop %v1695
    %v1698 = vtanh.pop %v1696
    %v1699 = vmul.f32 %v1688, %v1697
    %v1700 = vmul.f32 %v1690, %v1698
    %1701 = vmatprep.subr.mxu0 %v588
    %1702 = vmatpush1.msra.mxu0 %v587
    %1703 = vmatprep.subr.mxu0 %v592
    %1704 = vmatpush1.msra.mxu0 %v591
    %1705 = vmatprep.subr.mxu0 %v596
    %1706 = vmatpush1.msra.mxu0 %v595
    %1707 = vmatprep.subr.mxu0 %v600
    %1708 = vmatpush1.msra.mxu0 %v599
    %1709 = vmatprep.subr.mxu0 %v604
    %1710 = vmatpush1.msra.mxu0 %v603
    %1711 = vmatprep.subr.mxu0 %v608
    %1712 = vmatpush1.msra.mxu0 %v607
    %1713 = vmatprep.subr.mxu0 %v612
    %1714 = vmatpush1.msra.mxu0 %v611
    %1715 = vmatprep.subr.mxu0 %v616
    %1716 = vmatpush1.msra.mxu0 %v615
    %1717 = vmatprep.subr.mxu0 %v620
    %1718 = vmatpush1.msra.mxu0 %v619
    %1719 = vmatprep.subr.mxu0 %v624
    %1720 = vmatpush1.msra.mxu0 %v623
    %1721 = vmatprep.subr.mxu0 %v628
    %1722 = vmatpush1.msra.mxu0 %v627
    %1723 = vmatprep.subr.mxu0 %v632
    %1724 = vmatpush1.msra.mxu0 %v631
    %1725 = vmatprep.subr.mxu0 %v636
    %1726 = vmatpush1.msra.mxu0 %v635
    %1727 = vmatprep.subr.mxu0 %v640
    %1728 = vmatpush1.msra.mxu0 %v639
    %1729 = vmatprep.subr.mxu0 %v644
    %1730 = vmatpush1.msra.mxu0 %v643
    %1731 = vmatprep.subr.mxu0 %v648
    %1732 = vmatpush1.msra.mxu0 %v647
    %1733 = vmatprep.subr.mxu0 0.0
    %1734 = vmatpush1.msra.mxu0 0.0
    %1735 = vmatprep.subr.mxu0 0.0
    %1736 = vmatpush1.msra.mxu0 0.0
    %1737 = vmatprep.subr.mxu0 0.0
    %1738 = vmatpush1.msra.mxu0 0.0
    %1739 = vmatprep.subr.mxu0 0.0
    %1740 = vmatpush1.msra.mxu0 0.0
    %1741 = vmatprep.subr.mxu0 0.0
    %1742 = vmatpush1.msra.mxu0 0.0
    %1743 = vmatprep.subr.mxu0 0.0
    %1744 = vmatpush1.msra.mxu0 0.0
    %1745 = vmatprep.subr.mxu0 0.0
    %1746 = vmatpush1.msra.mxu0 0.0
    %1747 = vmatprep.subr.mxu0 0.0
    %1748 = vmatpush1.msra.mxu0 0.0
    %1749 = vmatprep.subr.mxu0 0.0
    %1750 = vmatpush1.msra.mxu0 0.0
    %1751 = vmatprep.subr.mxu0 0.0
    %1752 = vmatpush1.msra.mxu0 0.0
    %1753 = vmatprep.subr.mxu0 0.0
    %1754 = vmatpush1.msra.mxu0 0.0
    %1755 = vmatprep.subr.mxu0 0.0
    %1756 = vmatpush1.msra.mxu0 0.0
    %1757 = vmatprep.subr.mxu0 0.0
    %1758 = vmatpush1.msra.mxu0 0.0
    %1759 = vmatprep.subr.mxu0 0.0
    %1760 = vmatpush1.msra.mxu0 0.0
    %1761 = vmatprep.subr.mxu0 0.0
    %1762 = vmatpush1.msra.mxu0 0.0
    %1763 = vmatprep.subr.mxu0 0.0
    %1764 = vmatpush1.msra.mxu0 0.0
    %1765 = vmatprep.mubr.f32.mxu0 0.0
    %1766 = vmatmul.mubr.f32.gmra.mrb[0].mxu0 %v1699
    %v1767 = vpop.f32.mrb[0].mxu0
    %v1768 = vadd.f32 0.0, %v1767
    %v1769 = vpop.f32.mrb[0].mxu0
    %v1770 = vadd.f32 0.0, %v1769
    %1771 = vmatprep.mubr.f32.mxu0 0.0
    %1772 = vmatmul.mubr.f32.gmra.mrb[0].mxu0 %v1700
    %v1773 = vpop.f32.mrb[0].mxu0
    %v1774 = vadd.f32 0.0, %v1773
    %v1775 = vpop.f32.mrb[0].mxu0
    %v1776 = vadd.f32 0.0, %v1775
    %1777 = vdwg.mxu0
    %1778 = vmatprep.subr.mxu0 %v590
    %1779 = vmatpush1.msra.mxu0 %v589
    %1780 = vmatprep.subr.mxu0 %v594
    %1781 = vmatpush1.msra.mxu0 %v593
    %1782 = vmatprep.subr.mxu0 %v598
    %1783 = vmatpush1.msra.mxu0 %v597
    %1784 = vmatprep.subr.mxu0 %v602
    %1785 = vmatpush1.msra.mxu0 %v601
    %1786 = vmatprep.subr.mxu0 %v606
    %1787 = vmatpush1.msra.mxu0 %v605
    %1788 = vmatprep.subr.mxu0 %v610
    %1789 = vmatpush1.msra.mxu0 %v609
    %1790 = vmatprep.subr.mxu0 %v614
    %1791 = vmatpush1.msra.mxu0 %v613
    %1792 = vmatprep.subr.mxu0 %v618
    %1793 = vmatpush1.msra.mxu0 %v617
    %1794 = vmatprep.subr.mxu0 %v622
    %1795 = vmatpush1.msra.mxu0 %v621
    %1796 = vmatprep.subr.mxu0 %v626
    %1797 = vmatpush1.msra.mxu0 %v625
    %1798 = vmatprep.subr.mxu0 %v630
    %1799 = vmatpush1.msra.mxu0 %v629
    %1800 = vmatprep.subr.mxu0 %v634
    %1801 = vmatpush1.msra.mxu0 %v633
    %1802 = vmatprep.subr.mxu0 %v638
    %1803 = vmatpush1.msra.mxu0 %v637
    %1804 = vmatprep.subr.mxu0 %v642
    %1805 = vmatpush1.msra.mxu0 %v641
    %1806 = vmatprep.subr.mxu0 %v646
    %1807 = vmatpush1.msra.mxu0 %v645
    %1808 = vmatprep.subr.mxu0 %v650
    %1809 = vmatpush1.msra.mxu0 %v649
    %1810 = vmatprep.subr.mxu0 0.0
    %1811 = vmatpush1.msra.mxu0 0.0
    %1812 = vmatprep.subr.mxu0 0.0
    %1813 = vmatpush1.msra.mxu0 0.0
    %1814 = vmatprep.subr.mxu0 0.0
    %1815 = vmatpush1.msra.mxu0 0.0
    %1816 = vmatprep.subr.mxu0 0.0
    %1817 = vmatpush1.msra.mxu0 0.0
    %1818 = vmatprep.subr.mxu0 0.0
    %1819 = vmatpush1.msra.mxu0 0.0
    %1820 = vmatprep.subr.mxu0 0.0
    %1821 = vmatpush1.msra.mxu0 0.0
    %1822 = vmatprep.subr.mxu0 0.0
    %1823 = vmatpush1.msra.mxu0 0.0
    %1824 = vmatprep.subr.mxu0 0.0
    %1825 = vmatpush1.msra.mxu0 0.0
    %1826 = vmatprep.subr.mxu0 0.0
    %1827 = vmatpush1.msra.mxu0 0.0
    %1828 = vmatprep.subr.mxu0 0.0
    %1829 = vmatpush1.msra.mxu0 0.0
    %1830 = vmatprep.subr.mxu0 0.0
    %1831 = vmatpush1.msra.mxu0 0.0
    %1832 = vmatprep.subr.mxu0 0.0
    %1833 = vmatpush1.msra.mxu0 0.0
    %1834 = vmatprep.subr.mxu0 0.0
    %1835 = vmatpush1.msra.mxu0 0.0
    %1836 = vmatprep.subr.mxu0 0.0
    %1837 = vmatpush1.msra.mxu0 0.0
    %1838 = vmatprep.subr.mxu0 0.0
    %1839 = vmatpush1.msra.mxu0 0.0
    %1840 = vmatprep.subr.mxu0 0.0
    %1841 = vmatpush1.msra.mxu0 0.0
    %1842 = vmatprep.mubr.f32.mxu0 0.0
    %1843 = vmatmul.mubr.f32.gmra.mrb[0].mxu0 %v1699
    %v1844 = vpop.f32.mrb[0].mxu0
    %v1845 = vadd.f32 0.0, %v1844
    %v1846 = vpop.f32.mrb[0].mxu0
    %v1847 = vadd.f32 0.0, %v1846
    %1848 = vmatprep.mubr.f32.mxu0 0.0
    %1849 = vmatmul.mubr.f32.gmra.mrb[0].mxu0 %v1700
    %v1850 = vpop.f32.mrb[0].mxu0
    %v1851 = vadd.f32 0.0, %v1850
    %v1852 = vpop.f32.mrb[0].mxu0
    %v1853 = vadd.f32 0.0, %v1852
    %1854 = vdwg.mxu0
    %v1855 = vadd.f32 %v392, %v1768
    %v1856 = vadd.f32 %v394, %v1770
    %v1857 = vadd.f32 %v553, %v1845
    %v1858 = vadd.f32 %v555, %v1847
    %v1859 = vadd.f32 %v398, %v1774
    %v1860 = vadd.f32 %v400, %v1776
    %v1861 = vadd.f32 %v559, %v1851
    %v1862 = vadd.f32 %v561, %v1853
    %v1863 = vxor.u32 %v1855, 2147483648
    %v1864 = vxor.u32 %v1859, 2147483648
    %v1865 = vmul.f32 %v1863, 1.442695
    %v1866 = vpow.pop %v1865
    %v1867 = vmul.f32 %v1864, 1.442695
    %v1868 = vpow.pop %v1867
    %v1869 = vadd.f32 %v1866, 1.0
    %v1870 = vadd.f32 %v1868, 1.0
    %v1871 = vrcp.pop %v1869
    %v1872 = vmul.f32 1.0, %v1871
    %v1873 = vrcp.pop %v1870
    %v1874 = vmul.f32 1.0, %v1873
    %v1875 = vxor.u32 %v1856, 2147483648
    %v1876 = vxor.u32 %v1860, 2147483648
    %v1877 = vmul.f32 %v1875, 1.442695
    %v1878 = vpow.pop %v1877
    %v1879 = vmul.f32 %v1876, 1.442695
    %v1880 = vpow.pop %v1879
    %v1881 = vadd.f32 %v1878, 1.0
    %v1882 = vadd.f32 %v1880, 1.0
    %v1883 = vrcp.pop %v1881
    %v1884 = vmul.f32 1.0, %v1883
    %v1885 = vrcp.pop %v1882
    %v1886 = vmul.f32 1.0, %v1885
    %v1887 = vtanh.pop %v1857
    %v1888 = vtanh.pop %v1861
    %v1889 = vxor.u32 %v1858, 2147483648
    %v1890 = vxor.u32 %v1862, 2147483648
    %v1891 = vmul.f32 %v1889, 1.442695
    %v1892 = vpow.pop %v1891
    %v1893 = vmul.f32 %v1890, 1.442695
    %v1894 = vpow.pop %v1893
    %v1895 = vadd.f32 %v1892, 1.0
    %v1896 = vadd.f32 %v1894, 1.0
    %v1897 = vrcp.pop %v1895
    %v1898 = vmul.f32 1.0, %v1897
    %v1899 = vrcp.pop %v1896
    %v1900 = vmul.f32 1.0, %v1899
    %v1901 = vmul.f32 %v1884, %v1695
    %v1902 = vmul.f32 %v1886, %v1696
    %v1903 = vmul.f32 %v1872, %v1887
    %v1904 = vmul.f32 %v1874, %v1888
    %v1905 = vadd.f32 %v1901, %v1903
    %v1906 = vadd.f32 %v1902, %v1904
    %v1907 = vtanh.pop %v1905
    %v1908 = vtanh.pop %v1906
    %v1909 = vmul.f32 %v1898, %v1907
    %v1910 = vmul.f32 %v1900, %v1908
    %1911 = vmatprep.subr.mxu0 %v588
    %1912 = vmatpush1.msra.mxu0 %v587
    %1913 = vmatprep.subr.mxu0 %v592
    %1914 = vmatpush1.msra.mxu0 %v591
    %1915 = vmatprep.subr.mxu0 %v596
    %1916 = vmatpush1.msra.mxu0 %v595
    %1917 = vmatprep.subr.mxu0 %v600
    %1918 = vmatpush1.msra.mxu0 %v599
    %1919 = vmatprep.subr.mxu0 %v604
    %1920 = vmatpush1.msra.mxu0 %v603
    %1921 = vmatprep.subr.mxu0 %v608
    %1922 = vmatpush1.msra.mxu0 %v607
    %1923 = vmatprep.subr.mxu0 %v612
    %1924 = vmatpush1.msra.mxu0 %v611
    %1925 = vmatprep.subr.mxu0 %v616
    %1926 = vmatpush1.msra.mxu0 %v615
    %1927 = vmatprep.subr.mxu0 %v620
    %1928 = vmatpush1.msra.mxu0 %v619
    %1929 = vmatprep.subr.mxu0 %v624
    %1930 = vmatpush1.msra.mxu0 %v623
    %1931 = vmatprep.subr.mxu0 %v628
    %1932 = vmatpush1.msra.mxu0 %v627
    %1933 = vmatprep.subr.mxu0 %v632
    %1934 = vmatpush1.msra.mxu0 %v631
    %1935 = vmatprep.subr.mxu0 %v636
    %1936 = vmatpush1.msra.mxu0 %v635
    %1937 = vmatprep.subr.mxu0 %v640
    %1938 = vmatpush1.msra.mxu0 %v639
    %1939 = vmatprep.subr.mxu0 %v644
    %1940 = vmatpush1.msra.mxu0 %v643
    %1941 = vmatprep.subr.mxu0 %v648
    %1942 = vmatpush1.msra.mxu0 %v647
    %1943 = vmatprep.subr.mxu0 0.0
    %1944 = vmatpush1.msra.mxu0 0.0
    %1945 = vmatprep.subr.mxu0 0.0
    %1946 = vmatpush1.msra.mxu0 0.0
    %1947 = vmatprep.subr.mxu0 0.0
    %1948 = vmatpush1.msra.mxu0 0.0
    %1949 = vmatprep.subr.mxu0 0.0
    %1950 = vmatpush1.msra.mxu0 0.0
    %1951 = vmatprep.subr.mxu0 0.0
    %1952 = vmatpush1.msra.mxu0 0.0
    %1953 = vmatprep.subr.mxu0 0.0
    %1954 = vmatpush1.msra.mxu0 0.0
    %1955 = vmatprep.subr.mxu0 0.0
    %1956 = vmatpush1.msra.mxu0 0.0
    %1957 = vmatprep.subr.mxu0 0.0
    %1958 = vmatpush1.msra.mxu0 0.0
    %1959 = vmatprep.subr.mxu0 0.0
    %1960 = vmatpush1.msra.mxu0 0.0
    %1961 = vmatprep.subr.mxu0 0.0
    %1962 = vmatpush1.msra.mxu0 0.0
    %1963 = vmatprep.subr.mxu0 0.0
    %1964 = vmatpush1.msra.mxu0 0.0
    %1965 = vmatprep.subr.mxu0 0.0
    %1966 = vmatpush1.msra.mxu0 0.0
    %1967 = vmatprep.subr.mxu0 0.0
    %1968 = vmatpush1.msra.mxu0 0.0
    %1969 = vmatprep.subr.mxu0 0.0
    %1970 = vmatpush1.msra.mxu0 0.0
    %1971 = vmatprep.subr.mxu0 0.0
    %1972 = vmatpush1.msra.mxu0 0.0
    %1973 = vmatprep.subr.mxu0 0.0
    %1974 = vmatpush1.msra.mxu0 0.0
    %1975 = vmatprep.mubr.f32.mxu0 0.0
    %1976 = vmatmul.mubr.f32.gmra.mrb[0].mxu0 %v1909
    %v1977 = vpop.f32.mrb[0].mxu0
    %v1978 = vadd.f32 0.0, %v1977
    %v1979 = vpop.f32.mrb[0].mxu0
    %v1980 = vadd.f32 0.0, %v1979
    %1981 = vmatprep.mubr.f32.mxu0 0.0
    %1982 = vmatmul.mubr.f32.gmra.mrb[0].mxu0 %v1910
    %v1983 = vpop.f32.mrb[0].mxu0
    %v1984 = vadd.f32 0.0, %v1983
    %v1985 = vpop.f32.mrb[0].mxu0
    %v1986 = vadd.f32 0.0, %v1985
    %1987 = vdwg.mxu0
    %1988 = vmatprep.subr.mxu0 %v590
    %1989 = vmatpush1.msra.mxu0 %v589
    %1990 = vmatprep.subr.mxu0 %v594
    %1991 = vmatpush1.msra.mxu0 %v593
    %1992 = vmatprep.subr.mxu0 %v598
    %1993 = vmatpush1.msra.mxu0 %v597
    %1994 = vmatprep.subr.mxu0 %v602
    %1995 = vmatpush1.msra.mxu0 %v601
    %1996 = vmatprep.subr.mxu0 %v606
    %1997 = vmatpush1.msra.mxu0 %v605
    %1998 = vmatprep.subr.mxu0 %v610
    %1999 = vmatpush1.msra.mxu0 %v609
    %2000 = vmatprep.subr.mxu0 %v614
    %2001 = vmatpush1.msra.mxu0 %v613
    %2002 = vmatprep.subr.mxu0 %v618
    %2003 = vmatpush1.msra.mxu0 %v617
    %2004 = vmatprep.subr.mxu0 %v622
    %2005 = vmatpush1.msra.mxu0 %v621
    %2006 = vmatprep.subr.mxu0 %v626
    %2007 = vmatpush1.msra.mxu0 %v625
    %2008 = vmatprep.subr.mxu0 %v630
    %2009 = vmatpush1.msra.mxu0 %v629
    %2010 = vmatprep.subr.mxu0 %v634
    %2011 = vmatpush1.msra.mxu0 %v633
    %2012 = vmatprep.subr.mxu0 %v638
    %2013 = vmatpush1.msra.mxu0 %v637
    %2014 = vmatprep.subr.mxu0 %v642
    %2015 = vmatpush1.msra.mxu0 %v641
    %2016 = vmatprep.subr.mxu0 %v646
    %2017 = vmatpush1.msra.mxu0 %v645
    %2018 = vmatprep.subr.mxu0 %v650
    %2019 = vmatpush1.msra.mxu0 %v649
    %2020 = vmatprep.subr.mxu0 0.0
    %2021 = vmatpush1.msra.mxu0 0.0
    %2022 = vmatprep.subr.mxu0 0.0
    %2023 = vmatpush1.msra.mxu0 0.0
    %2024 = vmatprep.subr.mxu0 0.0
    %2025 = vmatpush1.msra.mxu0 0.0
    %2026 = vmatprep.subr.mxu0 0.0
    %2027 = vmatpush1.msra.mxu0 0.0
    %2028 = vmatprep.subr.mxu0 0.0
    %2029 = vmatpush1.msra.mxu0 0.0
    %2030 = vmatprep.subr.mxu0 0.0
    %2031 = vmatpush1.msra.mxu0 0.0
    %2032 = vmatprep.subr.mxu0 0.0
    %2033 = vmatpush1.msra.mxu0 0.0
    %2034 = vmatprep.subr.mxu0 0.0
    %2035 = vmatpush1.msra.mxu0 0.0
    %2036 = vmatprep.subr.mxu0 0.0
    %2037 = vmatpush1.msra.mxu0 0.0
    %2038 = vmatprep.subr.mxu0 0.0
    %2039 = vmatpush1.msra.mxu0 0.0
    %2040 = vmatprep.subr.mxu0 0.0
    %2041 = vmatpush1.msra.mxu0 0.0
    %2042 = vmatprep.subr.mxu0 0.0
    %2043 = vmatpush1.msra.mxu0 0.0
    %2044 = vmatprep.subr.mxu0 0.0
    %2045 = vmatpush1.msra.mxu0 0.0
    %2046 = vmatprep.subr.mxu0 0.0
    %2047 = vmatpush1.msra.mxu0 0.0
    %2048 = vmatprep.subr.mxu0 0.0
    %2049 = vmatpush1.msra.mxu0 0.0
    %2050 = vmatprep.subr.mxu0 0.0
    %2051 = vmatpush1.msra.mxu0 0.0
    %2052 = vmatprep.mubr.f32.mxu0 0.0
    %2053 = vmatmul.mubr.f32.gmra.mrb[0].mxu0 %v1909
    %v2054 = vpop.f32.mrb[0].mxu0
    %v2055 = vadd.f32 0.0, %v2054
    %v2056 = vpop.f32.mrb[0].mxu0
    %v2057 = vadd.f32 0.0, %v2056
    %2058 = vmatprep.mubr.f32.mxu0 0.0
    %2059 = vmatmul.mubr.f32.gmra.mrb[0].mxu0 %v1910
    %v2060 = vpop.f32.mrb[0].mxu0
    %v2061 = vadd.f32 0.0, %v2060
    %v2062 = vpop.f32.mrb[0].mxu0
    %v2063 = vadd.f32 0.0, %v2062
    %2064 = vdwg.mxu0
    %v2065 = vadd.f32 %v404, %v1978
    %v2066 = vadd.f32 %v406, %v1980
    %v2067 = vadd.f32 %v565, %v2055
    %v2068 = vadd.f32 %v567, %v2057
    %v2069 = vadd.f32 %v410, %v1984
    %v2070 = vadd.f32 %v412, %v1986
    %v2071 = vadd.f32 %v571, %v2061
    %v2072 = vadd.f32 %v573, %v2063
    %v2073 = vxor.u32 %v2065, 2147483648
    %v2074 = vxor.u32 %v2069, 2147483648
    %v2075 = vmul.f32 %v2073, 1.442695
    %v2076 = vpow.pop %v2075
    %v2077 = vmul.f32 %v2074, 1.442695
    %v2078 = vpow.pop %v2077
    %v2079 = vadd.f32 %v2076, 1.0
    %v2080 = vadd.f32 %v2078, 1.0
    %v2081 = vrcp.pop %v2079
    %v2082 = vmul.f32 1.0, %v2081
    %v2083 = vrcp.pop %v2080
    %v2084 = vmul.f32 1.0, %v2083
    %v2085 = vxor.u32 %v2066, 2147483648
    %v2086 = vxor.u32 %v2070, 2147483648
    %v2087 = vmul.f32 %v2085, 1.442695
    %v2088 = vpow.pop %v2087
    %v2089 = vmul.f32 %v2086, 1.442695
    %v2090 = vpow.pop %v2089
    %v2091 = vadd.f32 %v2088, 1.0
    %v2092 = vadd.f32 %v2090, 1.0
    %v2093 = vrcp.pop %v2091
    %v2094 = vmul.f32 1.0, %v2093
    %v2095 = vrcp.pop %v2092
    %v2096 = vmul.f32 1.0, %v2095
    %v2097 = vtanh.pop %v2067
    %v2098 = vtanh.pop %v2071
    %v2099 = vxor.u32 %v2068, 2147483648
    %v2100 = vxor.u32 %v2072, 2147483648
    %v2101 = vmul.f32 %v2099, 1.442695
    %v2102 = vpow.pop %v2101
    %v2103 = vmul.f32 %v2100, 1.442695
    %v2104 = vpow.pop %v2103
    %v2105 = vadd.f32 %v2102, 1.0
    %v2106 = vadd.f32 %v2104, 1.0
    %v2107 = vrcp.pop %v2105
    %v2108 = vmul.f32 1.0, %v2107
    %v2109 = vrcp.pop %v2106
    %v2110 = vmul.f32 1.0, %v2109
    %v2111 = vmul.f32 %v2094, %v1905
    %v2112 = vmul.f32 %v2096, %v1906
    %v2113 = vmul.f32 %v2082, %v2097
    %v2114 = vmul.f32 %v2084, %v2098
    %v2115 = vadd.f32 %v2111, %v2113
    %v2116 = vadd.f32 %v2112, %v2114
    %v2117 = vtanh.pop %v2115
    %v2118 = vtanh.pop %v2116
    %v2119 = vmul.f32 %v2108, %v2117
    %v2120 = vmul.f32 %v2110, %v2118
    %2121 = vmatprep.subr.mxu0 %v588
    %2122 = vmatpush1.msra.mxu0 %v587
    %2123 = vmatprep.subr.mxu0 %v592
    %2124 = vmatpush1.msra.mxu0 %v591
    %2125 = vmatprep.subr.mxu0 %v596
    %2126 = vmatpush1.msra.mxu0 %v595
    %2127 = vmatprep.subr.mxu0 %v600
    %2128 = vmatpush1.msra.mxu0 %v599
    %2129 = vmatprep.subr.mxu0 %v604
    %2130 = vmatpush1.msra.mxu0 %v603
    %2131 = vmatprep.subr.mxu0 %v608
    %2132 = vmatpush1.msra.mxu0 %v607
    %2133 = vmatprep.subr.mxu0 %v612
    %2134 = vmatpush1.msra.mxu0 %v611
    %2135 = vmatprep.subr.mxu0 %v616
    %2136 = vmatpush1.msra.mxu0 %v615
    %2137 = vmatprep.subr.mxu0 %v620
    %2138 = vmatpush1.msra.mxu0 %v619
    %2139 = vmatprep.subr.mxu0 %v624
    %2140 = vmatpush1.msra.mxu0 %v623
    %2141 = vmatprep.subr.mxu0 %v628
    %2142 = vmatpush1.msra.mxu0 %v627
    %2143 = vmatprep.subr.mxu0 %v632
    %2144 = vmatpush1.msra.mxu0 %v631
    %2145 = vmatprep.subr.mxu0 %v636
    %2146 = vmatpush1.msra.mxu0 %v635
    %2147 = vmatprep.subr.mxu0 %v640
    %2148 = vmatpush1.msra.mxu0 %v639
    %2149 = vmatprep.subr.mxu0 %v644
    %2150 = vmatpush1.msra.mxu0 %v643
    %2151 = vmatprep.subr.mxu0 %v648
    %2152 = vmatpush1.msra.mxu0 %v647
    %2153 = vmatprep.subr.mxu0 0.0
    %2154 = vmatpush1.msra.mxu0 0.0
    %2155 = vmatprep.subr.mxu0 0.0
    %2156 = vmatpush1.msra.mxu0 0.0
    %2157 = vmatprep.subr.mxu0 0.0
    %2158 = vmatpush1.msra.mxu0 0.0
    %2159 = vmatprep.subr.mxu0 0.0
    %2160 = vmatpush1.msra.mxu0 0.0
    %2161 = vmatprep.subr.mxu0 0.0
    %2162 = vmatpush1.msra.mxu0 0.0
    %2163 = vmatprep.subr.mxu0 0.0
    %2164 = vmatpush1.msra.mxu0 0.0
    %2165 = vmatprep.subr.mxu0 0.0
    %2166 = vmatpush1.msra.mxu0 0.0
    %2167 = vmatprep.subr.mxu0 0.0
    %2168 = vmatpush1.msra.mxu0 0.0
    %2169 = vmatprep.subr.mxu0 0.0
    %2170 = vmatpush1.msra.mxu0 0.0
    %2171 = vmatprep.subr.mxu0 0.0
    %2172 = vmatpush1.msra.mxu0 0.0
    %2173 = vmatprep.subr.mxu0 0.0
    %2174 = vmatpush1.msra.mxu0 0.0
    %2175 = vmatprep.subr.mxu0 0.0
    %2176 = vmatpush1.msra.mxu0 0.0
    %2177 = vmatprep.subr.mxu0 0.0
    %2178 = vmatpush1.msra.mxu0 0.0
    %2179 = vmatprep.subr.mxu0 0.0
    %2180 = vmatpush1.msra.mxu0 0.0
    %2181 = vmatprep.subr.mxu0 0.0
    %2182 = vmatpush1.msra.mxu0 0.0
    %2183 = vmatprep.subr.mxu0 0.0
    %2184 = vmatpush1.msra.mxu0 0.0
    %2185 = vmatprep.mubr.f32.mxu0 0.0
    %2186 = vmatmul.mubr.f32.gmra.mrb[0].mxu0 %v2119
    %v2187 = vpop.f32.mrb[0].mxu0
    %v2188 = vadd.f32 0.0, %v2187
    %v2189 = vpop.f32.mrb[0].mxu0
    %v2190 = vadd.f32 0.0, %v2189
    %2191 = vmatprep.mubr.f32.mxu0 0.0
    %2192 = vmatmul.mubr.f32.gmra.mrb[0].mxu0 %v2120
    %v2193 = vpop.f32.mrb[0].mxu0
    %v2194 = vadd.f32 0.0, %v2193
    %v2195 = vpop.f32.mrb[0].mxu0
    %v2196 = vadd.f32 0.0, %v2195
    %2197 = vdwg.mxu0
    %2198 = vmatprep.subr.mxu0 %v590
    %2199 = vmatpush1.msra.mxu0 %v589
    %2200 = vmatprep.subr.mxu0 %v594
    %2201 = vmatpush1.msra.mxu0 %v593
    %2202 = vmatprep.subr.mxu0 %v598
    %2203 = vmatpush1.msra.mxu0 %v597
    %2204 = vmatprep.subr.mxu0 %v602
    %2205 = vmatpush1.msra.mxu0 %v601
    %2206 = vmatprep.subr.mxu0 %v606
    %2207 = vmatpush1.msra.mxu0 %v605
    %2208 = vmatprep.subr.mxu0 %v610
    %2209 = vmatpush1.msra.mxu0 %v609
    %2210 = vmatprep.subr.mxu0 %v614
    %2211 = vmatpush1.msra.mxu0 %v613
    %2212 = vmatprep.subr.mxu0 %v618
    %2213 = vmatpush1.msra.mxu0 %v617
    %2214 = vmatprep.subr.mxu0 %v622
    %2215 = vmatpush1.msra.mxu0 %v621
    %2216 = vmatprep.subr.mxu0 %v626
    %2217 = vmatpush1.msra.mxu0 %v625
    %2218 = vmatprep.subr.mxu0 %v630
    %2219 = vmatpush1.msra.mxu0 %v629
    %2220 = vmatprep.subr.mxu0 %v634
    %2221 = vmatpush1.msra.mxu0 %v633
    %2222 = vmatprep.subr.mxu0 %v638
    %2223 = vmatpush1.msra.mxu0 %v637
    %2224 = vmatprep.subr.mxu0 %v642
    %2225 = vmatpush1.msra.mxu0 %v641
    %2226 = vmatprep.subr.mxu0 %v646
    %2227 = vmatpush1.msra.mxu0 %v645
    %2228 = vmatprep.subr.mxu0 %v650
    %2229 = vmatpush1.msra.mxu0 %v649
    %2230 = vmatprep.subr.mxu0 0.0
    %2231 = vmatpush1.msra.mxu0 0.0
    %2232 = vmatprep.subr.mxu0 0.0
    %2233 = vmatpush1.msra.mxu0 0.0
    %2234 = vmatprep.subr.mxu0 0.0
    %2235 = vmatpush1.msra.mxu0 0.0
    %2236 = vmatprep.subr.mxu0 0.0
    %2237 = vmatpush1.msra.mxu0 0.0
    %2238 = vmatprep.subr.mxu0 0.0
    %2239 = vmatpush1.msra.mxu0 0.0
    %2240 = vmatprep.subr.mxu0 0.0
    %2241 = vmatpush1.msra.mxu0 0.0
    %2242 = vmatprep.subr.mxu0 0.0
    %2243 = vmatpush1.msra.mxu0 0.0
    %2244 = vmatprep.subr.mxu0 0.0
    %2245 = vmatpush1.msra.mxu0 0.0
    %2246 = vmatprep.subr.mxu0 0.0
    %2247 = vmatpush1.msra.mxu0 0.0
    %2248 = vmatprep.subr.mxu0 0.0
    %2249 = vmatpush1.msra.mxu0 0.0
    %2250 = vmatprep.subr.mxu0 0.0
    %2251 = vmatpush1.msra.mxu0 0.0
    %2252 = vmatprep.subr.mxu0 0.0
    %2253 = vmatpush1.msra.mxu0 0.0
    %2254 = vmatprep.subr.mxu0 0.0
    %2255 = vmatpush1.msra.mxu0 0.0
    %2256 = vmatprep.subr.mxu0 0.0
    %2257 = vmatpush1.msra.mxu0 0.0
    %2258 = vmatprep.subr.mxu0 0.0
    %2259 = vmatpush1.msra.mxu0 0.0
    %2260 = vmatprep.subr.mxu0 0.0
    %2261 = vmatpush1.msra.mxu0 0.0
    %2262 = vmatprep.mubr.f32.mxu0 0.0
    %2263 = vmatmul.mubr.f32.gmra.mrb[0].mxu0 %v2119
    %v2264 = vpop.f32.mrb[0].mxu0
    %v2265 = vadd.f32 0.0, %v2264
    %v2266 = vpop.f32.mrb[0].mxu0
    %v2267 = vadd.f32 0.0, %v2266
    %2268 = vmatprep.mubr.f32.mxu0 0.0
    %2269 = vmatmul.mubr.f32.gmra.mrb[0].mxu0 %v2120
    %v2270 = vpop.f32.mrb[0].mxu0
    %v2271 = vadd.f32 0.0, %v2270
    %v2272 = vpop.f32.mrb[0].mxu0
    %v2273 = vadd.f32 0.0, %v2272
    %2274 = vdwg.mxu0
    %v2275 = vadd.f32 %v416, %v2188
    %v2276 = vadd.f32 %v418, %v2190
    %v2277 = vadd.f32 %v577, %v2265
    %v2278 = vadd.f32 %v579, %v2267
    %v2279 = vadd.f32 %v422, %v2194
    %v2280 = vadd.f32 %v424, %v2196
    %v2281 = vadd.f32 %v583, %v2271
    %v2282 = vadd.f32 %v585, %v2273
    %v2283 = vxor.u32 %v2275, 2147483648
    %v2284 = vxor.u32 %v2279, 2147483648
    %v2285 = vmul.f32 %v2283, 1.442695
    %v2286 = vpow.pop %v2285
    %v2287 = vmul.f32 %v2284, 1.442695
    %v2288 = vpow.pop %v2287
    %v2289 = vadd.f32 %v2286, 1.0
    %v2290 = vadd.f32 %v2288, 1.0
    %v2291 = vrcp.pop %v2289
    %v2292 = vmul.f32 1.0, %v2291
    %v2293 = vrcp.pop %v2290
    %v2294 = vmul.f32 1.0, %v2293
    %v2295 = vxor.u32 %v2276, 2147483648
    %v2296 = vxor.u32 %v2280, 2147483648
    %v2297 = vmul.f32 %v2295, 1.442695
    %v2298 = vpow.pop %v2297
    %v2299 = vmul.f32 %v2296, 1.442695
    %v2300 = vpow.pop %v2299
    %v2301 = vadd.f32 %v2298, 1.0
    %v2302 = vadd.f32 %v2300, 1.0
    %v2303 = vrcp.pop %v2301
    %v2304 = vmul.f32 1.0, %v2303
    %v2305 = vrcp.pop %v2302
    %v2306 = vmul.f32 1.0, %v2305
    %v2307 = vtanh.pop %v2277
    %v2308 = vtanh.pop %v2281
    %v2309 = vxor.u32 %v2278, 2147483648
    %v2310 = vxor.u32 %v2282, 2147483648
    %v2311 = vmul.f32 %v2309, 1.442695
    %v2312 = vpow.pop %v2311
    %v2313 = vmul.f32 %v2310, 1.442695
    %v2314 = vpow.pop %v2313
    %v2315 = vadd.f32 %v2312, 1.0
    %v2316 = vadd.f32 %v2314, 1.0
    %v2317 = vrcp.pop %v2315
    %v2318 = vmul.f32 1.0, %v2317
    %v2319 = vrcp.pop %v2316
    %v2320 = vmul.f32 1.0, %v2319
    %v2321 = vmul.f32 %v2304, %v2115
    %v2322 = vmul.f32 %v2306, %v2116
    %v2323 = vmul.f32 %v2292, %v2307
    %v2324 = vmul.f32 %v2294, %v2308
    %v2325 = vadd.f32 %v2321, %v2323
    %v2326 = vadd.f32 %v2322, %v2324
    %v2327 = vtanh.pop %v2325
    %v2328 = vtanh.pop %v2326
    %v2329 = vmul.f32 %v2318, %v2327
    %v2330 = vmul.f32 %v2320, %v2328
    %v2331 = vld [vmem:[%s4] sm:$0xff]
    %v2332 = vld [vmem:[%s4 + $0x8] sm:$0xff]
    %v2333 = vld [vmem:[%s4 + $0x10] sm:$0xff]
    %v2334 = vld [vmem:[%s4 + $0x18] sm:$0xff]
    %v2335 = vld [vmem:[%s4 + $0x20] sm:$0xff]
    %v2336 = vld [vmem:[%s4 + $0x28] sm:$0xff]
    %v2337 = vld [vmem:[%s4 + $0x30] sm:$0xff]
    %v2338 = vld [vmem:[%s4 + $0x38] sm:$0xff]
    %v2339 = vld [vmem:[%s4 + $0x40] sm:$0xff]
    %v2340 = vld [vmem:[%s4 + $0x48] sm:$0xff]
    %v2341 = vld [vmem:[%s4 + $0x50] sm:$0xff]
    %v2342 = vld [vmem:[%s4 + $0x58] sm:$0xff]
    %v2343 = vld [vmem:[%s4 + $0x60] sm:$0xff]
    %v2344 = vld [vmem:[%s4 + $0x68] sm:$0xff]
    %v2345 = vld [vmem:[%s4 + $0x70] sm:$0xff]
    %v2346 = vld [vmem:[%s4 + $0x78] sm:$0xff]
    %v2347 = vld [vmem:[%s5] sm:$0x1]
    %v2349 = vlaneseq
    %v2350 = vshrl.u32 %v2349, 7
    %v2351 = vsub.s32 0, %v2350
    %v2352 = vrot.slane %v2347, %v2351
    %2354 = vmatprep.subr.mxu0 0.0
    %2355 = vmatpush1.msra.mxu0 %v2331
    %2356 = vmatprep.subr.mxu0 0.0
    %2357 = vmatpush1.msra.mxu0 %v2332
    %2358 = vmatprep.subr.mxu0 0.0
    %2359 = vmatpush1.msra.mxu0 %v2333
    %2360 = vmatprep.subr.mxu0 0.0
    %2361 = vmatpush1.msra.mxu0 %v2334
    %2362 = vmatprep.subr.mxu0 0.0
    %2363 = vmatpush1.msra.mxu0 %v2335
    %2364 = vmatprep.subr.mxu0 0.0
    %2365 = vmatpush1.msra.mxu0 %v2336
    %2366 = vmatprep.subr.mxu0 0.0
    %2367 = vmatpush1.msra.mxu0 %v2337
    %2368 = vmatprep.subr.mxu0 0.0
    %2369 = vmatpush1.msra.mxu0 %v2338
    %2370 = vmatprep.subr.mxu0 0.0
    %2371 = vmatpush1.msra.mxu0 %v2339
    %2372 = vmatprep.subr.mxu0 0.0
    %2373 = vmatpush1.msra.mxu0 %v2340
    %2374 = vmatprep.subr.mxu0 0.0
    %2375 = vmatpush1.msra.mxu0 %v2341
    %2376 = vmatprep.subr.mxu0 0.0
    %2377 = vmatpush1.msra.mxu0 %v2342
    %2378 = vmatprep.subr.mxu0 0.0
    %2379 = vmatpush1.msra.mxu0 %v2343
    %2380 = vmatprep.subr.mxu0 0.0
    %2381 = vmatpush1.msra.mxu0 %v2344
    %2382 = vmatprep.subr.mxu0 0.0
    %2383 = vmatpush1.msra.mxu0 %v2345
    %2384 = vmatprep.subr.mxu0 0.0
    %2385 = vmatpush1.msra.mxu0 %v2346
    %2386 = vmatprep.subr.mxu0 0.0
    %2387 = vmatpush1.msra.mxu0 0.0
    %2388 = vmatprep.subr.mxu0 0.0
    %2389 = vmatpush1.msra.mxu0 0.0
    %2390 = vmatprep.subr.mxu0 0.0
    %2391 = vmatpush1.msra.mxu0 0.0
    %2392 = vmatprep.subr.mxu0 0.0
    %2393 = vmatpush1.msra.mxu0 0.0
    %2394 = vmatprep.subr.mxu0 0.0
    %2395 = vmatpush1.msra.mxu0 0.0
    %2396 = vmatprep.subr.mxu0 0.0
    %2397 = vmatpush1.msra.mxu0 0.0
    %2398 = vmatprep.subr.mxu0 0.0
    %2399 = vmatpush1.msra.mxu0 0.0
    %2400 = vmatprep.subr.mxu0 0.0
    %2401 = vmatpush1.msra.mxu0 0.0
    %2402 = vmatprep.subr.mxu0 0.0
    %2403 = vmatpush1.msra.mxu0 0.0
    %2404 = vmatprep.subr.mxu0 0.0
    %2405 = vmatpush1.msra.mxu0 0.0
    %2406 = vmatprep.subr.mxu0 0.0
    %2407 = vmatpush1.msra.mxu0 0.0
    %2408 = vmatprep.subr.mxu0 0.0
    %2409 = vmatpush1.msra.mxu0 0.0
    %2410 = vmatprep.subr.mxu0 0.0
    %2411 = vmatpush1.msra.mxu0 0.0
    %2412 = vmatprep.subr.mxu0 0.0
    %2413 = vmatpush1.msra.mxu0 0.0
    %2414 = vmatprep.subr.mxu0 0.0
    %2415 = vmatpush1.msra.mxu0 0.0
    %2416 = vmatprep.subr.mxu0 0.0
    %2417 = vmatpush1.msra.mxu0 0.0
    %2418 = vmatprep.mubr.f32.mxu0 0.0
    %2419 = vmatmul.mubr.f32.gmra.mrb[0].mxu0 %v2329
    %v2420 = vpop.f32.mrb[0].mxu0
    %v2421 = vadd.f32 %v2352, %v2420
    %v2422 = vpop.f32.mrb[0].mxu0
    %2423 = vmatprep.mubr.f32.mxu0 0.0
    %2424 = vmatmul.mubr.f32.gmra.mrb[0].mxu0 %v2330
    %v2425 = vpop.f32.mrb[0].mxu0
    %v2426 = vadd.f32 %v2352, %v2425
    %v2427 = vpop.f32.mrb[0].mxu0
    %2428 = vdwg.mxu0
    %2429 = vmax.xlane.f32.xlu0 %v2421
    %v2430 = vpop.xlane.xlu0 %2429
    %2431 = vmax.xlane.f32.xlu0 %v2426
    %v2432 = vpop.xlane.xlu0 %2431
    %v2433 = vsub.f32 %v2421, %v2430
    %v2434 = vsub.f32 %v2426, %v2432
    %v2435 = vmul.f32 %v2433, 1.442695
    %v2436 = vpow.pop %v2435
    %v2437 = vmul.f32 %v2434, 1.442695
    %v2438 = vpow.pop %v2437
    %2439 = vadd.xlane.f32.xlu0 %v2436
    %v2440 = vpop.xlane.xlu0 %2439
    %2441 = vadd.xlane.f32.xlu0 %v2438
    %v2442 = vpop.xlane.xlu0 %2441
    %v2443 = vlog2.pop %v2440
    %v2444 = vmul.f32 %v2443, 0.6931472
    %v2445 = vlog2.pop %v2442
    %v2446 = vmul.f32 %v2445, 0.6931472
    %v2447 = vsub.f32 %v2433, %v2444
    %v2448 = vsub.f32 %v2434, %v2446
    %2449 = vst [vmem:[#allocation7] sm:$0xff] %v2447
    %2450 = vst [vmem:[#allocation7 + $0x8] sm:$0xff] %v2448
    // Predicated region
    $region34: #{_forward_impl.1} parent=1 // pred_check
      _
    $region35: #{_forward_impl.1} parent=1 // pred_check_branch
      %2452 = sbr.rel (0) target = $region37
    $region36: #{_forward_impl.1} parent=1 // pred_region
      %s2454 = ssub.s32 256, 256
      %2455 = vsyncadd [#allocation4], %s2454
      %s2456 = sshll.u32 [#allocation7], 4
      %s2457 = int_to_ptr.vmem [resolvable:$true] %s2456
      %2462 = dma.vmem_to_hbm [thread:$0]  %s2457, 256, %s6, [#allocation4], 128, 128, 8
    $region37: #{_forward_impl.1} parent=1 // pred_fallthru
      _
    // Predicated region
    $region38: #{_forward_impl.1} parent=1 // pred_check
      _
    $region39: #{_forward_impl.1} parent=1 // pred_check_branch
      %2464 = sbr.rel (0) target = $region41
    $region40: #{_forward_impl.1} parent=1 // pred_region
      %2465 = dma.done [#allocation4], 256
    $region41: #{_forward_impl.1} parent=1 // pred_fallthru
      _
    %2466 = vsyncpa [#allocation3], 1
    %2467 = vsyncpa [#allocation6], 1
    %2468 = vsyncpa [#allocation4], 1

</llo_original>
